<compile_context>
chip_gen: v6e
topology: v6e:2x2x1
jax: 0.10.0
libtpu: 0.0.40
codegen_flags: <defaults>
</compile_context>

<pallas_src>
import functools

import jax
import jax.numpy as jnp
from jax import lax
from jax.experimental import pallas as pl
from jax.experimental.pallas import tpu as pltpu


# ----------------------------------------------------------------------------
# tile selection
# ----------------------------------------------------------------------------
def _pick_row_tile(h, w, cin, cout, budget_bytes=4 * 1024 * 1024):
    """Largest divisor of `h` whose per-step working set fits `budget_bytes`.

    `th` must divide `h` and satisfy (th % 8 == 0 or th == h) so the
    (1, Cout, th, W) output block of the normalize kernel is BlockSpec-legal.
    Whole-image rows (th == h) is always a legal fallback.
    """
    wp = w + 2

    def work_bytes(th):
        return 4 * ((th + 2) * wp * cin      # haloed input window
                    + 9 * cin * th * wp      # im2col patches
                    + 2 * cout * th * wp)    # matmul result + output tile

    cands = [th for th in range(1, h + 1)
             if h % th == 0 and (th % 8 == 0 or th == h)]
    fitting = [th for th in cands if work_bytes(th) <= budget_bytes]
    return max(fitting) if fitting else min(cands)


# ----------------------------------------------------------------------------
# Kernel 1: fused 3x3 conv (single im2col matmul) + partial BN statistics.
# ----------------------------------------------------------------------------
def _conv_bn_stats_kernel(xh_ref, w_ref, y_ref, stats_ref, *, th, w, wp):
    """One (batch, row-tile) step.

    xh_ref   : (1, 1, Cin, (th+2)*wp + 2)  haloed, zero-padded, row-flattened
    w_ref    : (Cout, 9*Cin)               tap-major / ci-minor weights
    y_ref    : (1, 1, Cout, th*wp)         conv output, spatial on lanes
    stats_ref: (1, 1, Cout, 2)             per-tile [sum, sum of squares]
    """
    m = th * wp
    xw = xh_ref[0, 0]                                          # (Cin, MW)

    # im2col in VMEM/regs: 9 lane-shifted views concatenated along K
    # (tap-major, ci-minor -- matches the weight packing).  One MXU matmul,
    # K = 9*Cin.
    slabs = [xw[:, kh * wp + kw: kh * wp + kw + m]
             for kh in range(3) for kw in range(3)]            # 9 x (Cin, m)
    patches = jnp.concatenate(slabs, axis=0)                   # (9*Cin, m)

    y = jnp.dot(w_ref[...], patches,
                preferred_element_type=jnp.float32,
                precision=lax.Precision.HIGHEST)               # (Cout, m)
    y_ref[0, 0] = y                                            # dense stores

    # Partial BN statistics over valid columns only (each flattened row of wp
    # lanes carries 2 right-padding columns that are not real outputs).
    lane = lax.broadcasted_iota(jnp.int32, (1, m), 1)
    ym = jnp.where(lane % wp < w, y, 0.0)
    stats_ref[0, 0] = jnp.concatenate(
        [jnp.sum(ym, axis=1, keepdims=True),
         jnp.sum(ym * ym, axis=1, keepdims=True)], axis=1)     # (Cout, 2)


# ----------------------------------------------------------------------------
# Kernel 2: folded BatchNorm affine + ReLU, writing the NCHW output tile.
# ----------------------------------------------------------------------------
def _bn_relu_kernel(y_ref, scale_ref, shift_ref, o_ref, *, w):
    """
    y_ref    : (Cout, th, wp)    conv output tile (rows x padded width)
    scale_ref: (Cout, 1, 1)      gamma / sqrt(var + eps)
    shift_ref: (Cout, 1, 1)      beta - mean * gamma / sqrt(var + eps)
    o_ref    : (1, Cout, th, w)  final NCHW output block
    """
    z = jnp.maximum(y_ref[...] * scale_ref[...] + shift_ref[...], 0.0)
    o_ref[0] = z[:, :, :w]                 # drop the 2 pad columns per row


# ----------------------------------------------------------------------------
# Full Conv2DBlock forward.
# ----------------------------------------------------------------------------
@jax.jit
def conv2d_block_forward(x_nchw, w_conv, b_conv, gamma, beta):
    # Conv bias is a per-channel constant: exactly cancelled by the
    # train-mode BatchNorm mean subtraction, so it is not computed at all.
    del b_conv

    N, Cin, H, W = x_nchw.shape
    Cout = w_conv.shape[0]
    Wp = W + 2
    TH = _pick_row_tile(H, W, Cin, Cout)
    nrt = H // TH
    m = TH * Wp                      # flattened (padded-width) tile extent
    MW = (TH + 2) * Wp + 2           # haloed window + 2 slack lanes

    # --- XLA prep: one fused pass over the small Cin-sized input -----------
    # zero-pad spatially, cut overlapping row windows (2-row halo), flatten.
    xp = jnp.pad(x_nchw, ((0, 0), (0, 0), (1, 1), (1, 1)))
    xhalo = jnp.stack(
        [xp[:, :, i * TH:i * TH + TH + 2, :] for i in range(nrt)], axis=1)
    xhalo = xhalo.reshape(N, nrt, Cin, (TH + 2) * Wp)
    xhalo = jnp.pad(xhalo, ((0, 0), (0, 0), (0, 0), (0, 2)))   # -> (..., MW)

    # torch weight (Cout, Cin, 3, 3) -> (Cout, 9*Cin), tap-major / ci-minor.
    wmat = jnp.transpose(w_conv, (0, 2, 3, 1)).reshape(Cout, 9 * Cin)

    conv_kernel = functools.partial(_conv_bn_stats_kernel, th=TH, w=W, wp=Wp)
    yc, stats = pl.pallas_call(
        conv_kernel,
        out_shape=(jax.ShapeDtypeStruct((N, nrt, Cout, m), jnp.float32),
                   jax.ShapeDtypeStruct((N, nrt, Cout, 2), jnp.float32)),
        grid_spec=pltpu.PrefetchScalarGridSpec(
            num_scalar_prefetch=0,
            grid=(N, nrt),
            in_specs=[
                pl.BlockSpec((1, 1, Cin, MW), lambda n, i: (n, i, 0, 0)),
                pl.BlockSpec((Cout, 9 * Cin), lambda n, i: (0, 0)),
            ],
            out_specs=(
                pl.BlockSpec((1, 1, Cout, m), lambda n, i: (n, i, 0, 0)),
                pl.BlockSpec((1, 1, Cout, 2), lambda n, i: (n, i, 0, 0)),
            ),
        ),
        compiler_params=pltpu.CompilerParams(
            dimension_semantics=("parallel", "parallel"),
            vmem_limit_bytes=32 * 1024 * 1024),
    )(xhalo, wmat)

    # --- tiny O(Cout) reduction + BN affine folding (train-mode batch stats)
    count = float(N * H * W)
    tot = jnp.sum(stats, axis=(0, 1))                     # (Cout, 2)
    mean = tot[:, 0] / count
    var = jnp.maximum(tot[:, 1] / count - mean * mean, 0.0)   # biased var
    inv_std = lax.rsqrt(var + 1e-5)
    scale = (gamma * inv_std).reshape(Cout, 1, 1)
    shift = (beta - mean * gamma * inv_std).reshape(Cout, 1, 1)

    # Free (contiguity-preserving) view: (N, nrt, Cout, m)->(N*nrt*Cout, TH, Wp)
    yc_view = yc.reshape(N * nrt * Cout, TH, Wp)

    bn_kernel = functools.partial(_bn_relu_kernel, w=W)
    out = pl.pallas_call(
        bn_kernel,
        out_shape=jax.ShapeDtypeStruct((N, Cout, H, W), jnp.float32),
        grid_spec=pltpu.PrefetchScalarGridSpec(
            num_scalar_prefetch=0,
            grid=(N, nrt),
            in_specs=[
                pl.BlockSpec((Cout, TH, Wp), lambda n, i: (n * nrt + i, 0, 0)),
                pl.BlockSpec((Cout, 1, 1), lambda n, i: (0, 0, 0)),
                pl.BlockSpec((Cout, 1, 1), lambda n, i: (0, 0, 0)),
            ],
            out_specs=pl.BlockSpec((1, Cout, TH, W), lambda n, i: (n, 0, i, 0)),
        ),
        compiler_params=pltpu.CompilerParams(
            dimension_semantics=("parallel", "parallel"),
            vmem_limit_bytes=32 * 1024 * 1024),
    )(yc_view, scale, shift)

    return out


# ----------------------------------------------------------------------------
# Pure-JAX reference with PyTorch train-mode semantics (for verification).
# ----------------------------------------------------------------------------
def _reference(x, w, b, gamma, beta, eps=1e-5):
    y = lax.conv_general_dilated(
        x, w, window_strides=(1, 1), padding=((1, 1), (1, 1)),
        dimension_numbers=("NCHW", "OIHW", "NCHW"),
        precision=lax.Precision.HIGHEST) + b.reshape(1, -1, 1, 1)
    mean = jnp.mean(y, axis=(0, 2, 3), keepdims=True)
    var = jnp.mean((y - mean) ** 2, axis=(0, 2, 3), keepdims=True)
    yn = (y - mean) * lax.rsqrt(var + eps)
    yn = yn * gamma.reshape(1, -1, 1, 1) + beta.reshape(1, -1, 1, 1)
    return jnp.maximum(yn, 0.0)


if __name__ == "__main__":
    key = jax.random.PRNGKey(0)
    kx, kw, kb = jax.random.split(key, 3)

    N, Cin, H, W = 2, 4, 16, 16
    Cout = 8

    x = jax.random.normal(kx, (N, Cin, H, W), jnp.float32)

    # Conv2d(in=Cin, out=Cout, k=3, p=1) params (torch layout (Cout, Cin, 3, 3))
    bound = 1.0 / (Cin * 9) ** 0.5
    w_conv = jax.random.uniform(kw, (Cout, Cin, 3, 3), jnp.float32, -bound, bound)
    b_conv = jax.random.uniform(kb, (Cout,), jnp.float32, -bound, bound)

    # BatchNorm2d params (PyTorch default init: weight=1, bias=0)
    gamma = jnp.ones((Cout,), jnp.float32)
    beta = jnp.zeros((Cout,), jnp.float32)

    out = conv2d_block_forward(x, w_conv, b_conv, gamma, beta)
    out = jax.block_until_ready(out)
    assert out.shape == (N, Cout, H, W), out.shape

    ref = _reference(x, w_conv, b_conv, gamma, beta)
    err = float(jnp.max(jnp.abs(out - ref)))
    assert err < 5e-3, f"max abs error vs reference: {err}"

    print("KERNEL_OK")
</pallas_src>

<mosaic_0001>
module attributes {stable_mosaic.version = 11 : i64} {
  func.func @_bn_relu_kernel(%arg0: i32, %arg1: i32, %arg2: memref<8x16x18xf32, #tpu.memory_space<vmem>>, %arg3: memref<8x1x1xf32, #tpu.memory_space<vmem>>, %arg4: memref<8x1x1xf32, #tpu.memory_space<vmem>>, %arg5: memref<1x8x16x16xf32, #tpu.memory_space<vmem>>) attributes {dimension_semantics = [#tpu.dimension_semantics<parallel>, #tpu.dimension_semantics<parallel>], iteration_bounds = array<i64: 2, 1>, scalar_prefetch = 0 : i64, scratch_operands = 0 : i64, tpu.core_type = #tpu.core_type<tc>, window_params = [{transform_indices = @transform_0, window_bounds = array<i64: 8, 16, 18>}, {pipeline_mode = #tpu.pipeline_mode<synchronous>, transform_indices = @transform_1, window_bounds = array<i64: 8, 1, 1>}, {pipeline_mode = #tpu.pipeline_mode<synchronous>, transform_indices = @transform_2, window_bounds = array<i64: 8, 1, 1>}, {transform_indices = @transform_3, window_bounds = array<i64: 1, 8, 16, 16>}]} {
    %c0 = arith.constant 0 : index
    %c0_0 = arith.constant 0 : index
    %c0_1 = arith.constant 0 : index
    %0 = vector.load %arg2[%c0, %c0_0, %c0_1] : memref<8x16x18xf32, #tpu.memory_space<vmem>>, vector<8x16x18xf32>
    %c0_2 = arith.constant 0 : index
    %c0_3 = arith.constant 0 : index
    %c0_4 = arith.constant 0 : index
    %1 = vector.load %arg3[%c0_2, %c0_3, %c0_4] : memref<8x1x1xf32, #tpu.memory_space<vmem>>, vector<8x1x1xf32>
    %2 = vector.broadcast %1 : vector<8x1x1xf32> to vector<8x16x18xf32>
    %3 = arith.mulf %0, %2 : vector<8x16x18xf32>
    %c0_5 = arith.constant 0 : index
    %c0_6 = arith.constant 0 : index
    %c0_7 = arith.constant 0 : index
    %4 = vector.load %arg4[%c0_5, %c0_6, %c0_7] : memref<8x1x1xf32, #tpu.memory_space<vmem>>, vector<8x1x1xf32>
    %5 = vector.broadcast %4 : vector<8x1x1xf32> to vector<8x16x18xf32>
    %6 = arith.addf %3, %5 : vector<8x16x18xf32>
    %cst = arith.constant 0.000000e+00 : f32
    %7 = vector.broadcast %cst : f32 to vector<8x16x18xf32>
    %8 = arith.maximumf %6, %7 : vector<8x16x18xf32>
    %9 = vector.extract_strided_slice %8 {offsets = [0, 0, 0], sizes = [8, 16, 16], strides = [1, 1, 1]} : vector<8x16x18xf32> to vector<8x16x16xf32>
    %c0_8 = arith.constant 0 : index
    %c0_9 = arith.constant 0 : index
    %c0_10 = arith.constant 0 : index
    %c0_11 = arith.constant 0 : index
    %10 = vector.load %arg5[%c0_8, %c0_9, %c0_10, %c0_11] : memref<1x8x16x16xf32, #tpu.memory_space<vmem>>, vector<1x8x16x16xf32>
    %11 = vector.shape_cast %10 : vector<1x8x16x16xf32> to vector<8x16x16xf32>
    %12 = vector.shape_cast %9 : vector<8x16x16xf32> to vector<1x8x16x16xf32>
    tpu.vector_store %arg5[%c0_8, %c0_9, %c0_10, %c0_11], %12 {strides = array<i32>} : memref<1x8x16x16xf32, #tpu.memory_space<vmem>>, vector<1x8x16x16xf32>,
    return
  }
  func.func @transform_0(%arg0: i32, %arg1: i32) -> (i32, i32, i32) {
    %c1_i32 = arith.constant 1 : i32
    %0 = arith.muli %arg0, %c1_i32 : i32
    %1 = arith.addi %0, %arg1 : i32
    %c0_i32 = arith.constant 0 : i32
    %c0_i32_0 = arith.constant 0 : i32
    %c0_i32_1 = arith.constant 0 : i32
    return %1, %c0_i32, %c0_i32_0 : i32, i32, i32
  }
  func.func @transform_1(%arg0: i32, %arg1: i32) -> (i32, i32, i32) {
    %c0_i32 = arith.constant 0 : i32
    %c0_i32_0 = arith.constant 0 : i32
    %c0_i32_1 = arith.constant 0 : i32
    %c0_i32_2 = arith.constant 0 : i32
    return %c0_i32, %c0_i32_0, %c0_i32_1 : i32, i32, i32
  }
  func.func @transform_2(%arg0: i32, %arg1: i32) -> (i32, i32, i32) {
    %c0_i32 = arith.constant 0 : i32
    %c0_i32_0 = arith.constant 0 : i32
    %c0_i32_1 = arith.constant 0 : i32
    %c0_i32_2 = arith.constant 0 : i32
    return %c0_i32, %c0_i32_0, %c0_i32_1 : i32, i32, i32
  }
  func.func @transform_3(%arg0: i32, %arg1: i32) -> (i32, i32, i32, i32) {
    %c0_i32 = arith.constant 0 : i32
    %c0_i32_0 = arith.constant 0 : i32
    %c0_i32_1 = arith.constant 0 : i32
    return %arg0, %c0_i32, %arg1, %c0_i32_0 : i32, i32, i32, i32
  }
}

module attributes {stable_mosaic.version = 11 : i64} {
  func.func @_conv_bn_stats_kernel(%arg0: i32, %arg1: i32, %arg2: memref<1x1x4x326xf32, #tpu.memory_space<vmem>>, %arg3: memref<8x36xf32, #tpu.memory_space<vmem>>, %arg4: memref<1x1x8x288xf32, #tpu.memory_space<vmem>>, %arg5: memref<1x1x8x2xf32, #tpu.memory_space<vmem>>) attributes {dimension_semantics = [#tpu.dimension_semantics<parallel>, #tpu.dimension_semantics<parallel>], iteration_bounds = array<i64: 2, 1>, scalar_prefetch = 0 : i64, scratch_operands = 0 : i64, tpu.core_type = #tpu.core_type<tc>, window_params = [{transform_indices = @transform_0, window_bounds = array<i64: 1, 1, 4, 326>}, {pipeline_mode = #tpu.pipeline_mode<synchronous>, transform_indices = @transform_1, window_bounds = array<i64: 8, 36>}, {transform_indices = @transform_2, window_bounds = array<i64: 1, 1, 8, 288>}, {transform_indices = @transform_3, window_bounds = array<i64: 1, 1, 8, 2>}]} {
    %c0 = arith.constant 0 : index
    %c0_0 = arith.constant 0 : index
    %c0_1 = arith.constant 0 : index
    %c0_2 = arith.constant 0 : index
    %0 = vector.load %arg2[%c0, %c0_0, %c0_1, %c0_2] : memref<1x1x4x326xf32, #tpu.memory_space<vmem>>, vector<1x1x4x326xf32>
    %1 = vector.shape_cast %0 : vector<1x1x4x326xf32> to vector<4x326xf32>
    %2 = vector.extract_strided_slice %1 {offsets = [0, 0], sizes = [4, 288], strides = [1, 1]} : vector<4x326xf32> to vector<4x288xf32>
    %3 = vector.extract_strided_slice %1 {offsets = [0, 1], sizes = [4, 288], strides = [1, 1]} : vector<4x326xf32> to vector<4x288xf32>
    %4 = vector.extract_strided_slice %1 {offsets = [0, 2], sizes = [4, 288], strides = [1, 1]} : vector<4x326xf32> to vector<4x288xf32>
    %5 = vector.extract_strided_slice %1 {offsets = [0, 18], sizes = [4, 288], strides = [1, 1]} : vector<4x326xf32> to vector<4x288xf32>
    %6 = vector.extract_strided_slice %1 {offsets = [0, 19], sizes = [4, 288], strides = [1, 1]} : vector<4x326xf32> to vector<4x288xf32>
    %7 = vector.extract_strided_slice %1 {offsets = [0, 20], sizes = [4, 288], strides = [1, 1]} : vector<4x326xf32> to vector<4x288xf32>
    %8 = vector.extract_strided_slice %1 {offsets = [0, 36], sizes = [4, 288], strides = [1, 1]} : vector<4x326xf32> to vector<4x288xf32>
    %9 = vector.extract_strided_slice %1 {offsets = [0, 37], sizes = [4, 288], strides = [1, 1]} : vector<4x326xf32> to vector<4x288xf32>
    %10 = vector.extract_strided_slice %1 {offsets = [0, 38], sizes = [4, 288], strides = [1, 1]} : vector<4x326xf32> to vector<4x288xf32>
    %11 = tpu.concatenate %2, %3, %4, %5, %6, %7, %8, %9, %10 in 0 : vector<4x288xf32>, vector<4x288xf32>, vector<4x288xf32>, vector<4x288xf32>, vector<4x288xf32>, vector<4x288xf32>, vector<4x288xf32>, vector<4x288xf32>, vector<4x288xf32> -> vector<36x288xf32>
    %c0_3 = arith.constant 0 : index
    %c0_4 = arith.constant 0 : index
    %12 = vector.load %arg3[%c0_3, %c0_4] : memref<8x36xf32, #tpu.memory_space<vmem>>, vector<8x36xf32>
    %cst = arith.constant dense<0.000000e+00> : vector<8x288xf32>
    %13 = tpu.matmul %12, %11, %cst {dimension_numbers = #tpu.dot_dimension_numbers<[1], [0], [0], [1], [0, 0, 1, 1], [], []>, precision = #tpu.contract_precision<fp32>} : vector<8x36xf32>, vector<36x288xf32>, vector<8x288xf32> -> vector<8x288xf32>
    %c0_5 = arith.constant 0 : index
    %c0_6 = arith.constant 0 : index
    %c0_7 = arith.constant 0 : index
    %c0_8 = arith.constant 0 : index
    %14 = vector.load %arg4[%c0_5, %c0_6, %c0_7, %c0_8] : memref<1x1x8x288xf32, #tpu.memory_space<vmem>>, vector<1x1x8x288xf32>
    %15 = vector.shape_cast %14 : vector<1x1x8x288xf32> to vector<8x288xf32>
    %16 = vector.shape_cast %13 : vector<8x288xf32> to vector<1x1x8x288xf32>
    tpu.vector_store %arg4[%c0_5, %c0_6, %c0_7, %c0_8], %16 {strides = array<i32>} : memref<1x1x8x288xf32, #tpu.memory_space<vmem>>, vector<1x1x8x288xf32>,
    %17 = tpu.iota {dimensions = array<i32: 1>} : vector<1x288xi32>
    %c18_i32 = arith.constant 18 : i32
    %c0_i32 = arith.constant 0 : i32
    %18 = arith.cmpi eq, %c18_i32, %c0_i32 : i32
    %c1_i32 = arith.constant 1 : i32
    %19 = arith.select %18, %c1_i32, %c18_i32 : i32
    %20 = vector.broadcast %19 : i32 to vector<1x288xi32>
    %21 = arith.remsi %17, %20 : vector<1x288xi32>
    %c0_i32_9 = arith.constant 0 : i32
    %22 = vector.broadcast %c0_i32_9 : i32 to vector<1x288xi32>
    %23 = arith.cmpi ne, %21, %22 : vector<1x288xi32>
    %c0_i32_10 = arith.constant 0 : i32
    %24 = vector.broadcast %c0_i32_10 : i32 to vector<1x288xi32>
    %25 = arith.cmpi slt, %21, %24 : vector<1x288xi32>
    %c0_i32_11 = arith.constant 0 : i32
    %26 = arith.cmpi slt, %19, %c0_i32_11 : i32
    %27 = vector.broadcast %26 : i1 to vector<1x288xi1>
    %28 = vector.broadcast %27 : vector<1x288xi1> to vector<1x288xi1>
    %29 = arith.xori %25, %28 : vector<1x288xi1>
    %30 = arith.andi %29, %23 : vector<1x288xi1>
    %31 = vector.broadcast %19 : i32 to vector<1x288xi32>
    %32 = arith.addi %21, %31 : vector<1x288xi32>
    %33 = arith.select %30, %32, %21 : vector<1x288xi1>, vector<1x288xi32>
    %c16_i32 = arith.constant 16 : i32
    %34 = vector.broadcast %c16_i32 : i32 to vector<1x288xi32>
    %35 = arith.cmpi slt, %33, %34 : vector<1x288xi32>
    %cst_12 = arith.constant 0.000000e+00 : f32
    %36 = vector.shape_cast %35 : vector<1x288xi1> to vector<1x288xi1>
    %37 = vector.broadcast %36 : vector<1x288xi1> to vector<8x288xi1>
    %38 = vector.broadcast %cst_12 : f32 to vector<8x288xf32>
    %39 = arith.select %37, %13, %38 : vector<8x288xi1>, vector<8x288xf32>
    %cst_13 = arith.constant dense<0.000000e+00> : vector<8xf32>
    %40 = vector.multi_reduction <add>, %39, %cst_13 [1] : vector<8x288xf32> to vector<8xf32>
    %41 = vector.shape_cast %40 : vector<8xf32> to vector<8x1xf32>
    %42 = arith.mulf %39, %39 : vector<8x288xf32>
    %cst_14 = arith.constant dense<0.000000e+00> : vector<8xf32>
    %43 = vector.multi_reduction <add>, %42, %cst_14 [1] : vector<8x288xf32> to vector<8xf32>
    %44 = vector.shape_cast %43 : vector<8xf32> to vector<8x1xf32>
    %45 = tpu.concatenate %41, %44 in 1 : vector<8x1xf32>, vector<8x1xf32> -> vector<8x2xf32>
    %c0_15 = arith.constant 0 : index
    %c0_16 = arith.constant 0 : index
    %c0_17 = arith.constant 0 : index
    %c0_18 = arith.constant 0 : index
    %46 = vector.load %arg5[%c0_15, %c0_16, %c0_17, %c0_18] : memref<1x1x8x2xf32, #tpu.memory_space<vmem>>, vector<1x1x8x2xf32>
    %47 = vector.shape_cast %46 : vector<1x1x8x2xf32> to vector<8x2xf32>
    %48 = vector.shape_cast %45 : vector<8x2xf32> to vector<1x1x8x2xf32>
    tpu.vector_store %arg5[%c0_15, %c0_16, %c0_17, %c0_18], %48 {strides = array<i32>} : memref<1x1x8x2xf32, #tpu.memory_space<vmem>>, vector<1x1x8x2xf32>,
    return
  }
  func.func @transform_0(%arg0: i32, %arg1: i32) -> (i32, i32, i32, i32) {
    %c0_i32 = arith.constant 0 : i32
    %c0_i32_0 = arith.constant 0 : i32
    %c0_i32_1 = arith.constant 0 : i32
    return %arg0, %arg1, %c0_i32, %c0_i32_0 : i32, i32, i32, i32
  }
  func.func @transform_1(%arg0: i32, %arg1: i32) -> (i32, i32) {
    %c0_i32 = arith.constant 0 : i32
    %c0_i32_0 = arith.constant 0 : i32
    %c0_i32_1 = arith.constant 0 : i32
    return %c0_i32, %c0_i32_0 : i32, i32
  }
  func.func @transform_2(%arg0: i32, %arg1: i32) -> (i32, i32, i32, i32) {
    %c0_i32 = arith.constant 0 : i32
    %c0_i32_0 = arith.constant 0 : i32
    %c0_i32_1 = arith.constant 0 : i32
    return %arg0, %arg1, %c0_i32, %c0_i32_0 : i32, i32, i32, i32
  }
  func.func @transform_3(%arg0: i32, %arg1: i32) -> (i32, i32, i32, i32) {
    %c0_i32 = arith.constant 0 : i32
    %c0_i32_0 = arith.constant 0 : i32
    %c0_i32_1 = arith.constant 0 : i32
    return %arg0, %arg1, %c0_i32, %c0_i32_0 : i32, i32, i32, i32
  }
}

</mosaic_0001>

<llo_original>
// kernel: conv2d_block_forward.3
$region0: #{conv2d_block_forward.3}
  #allocation0 [shape = 'u32[]', space=smem, size = 0x4, offset = 0x4, fixed_abs, tag = 'smem constant byte address 0x4 - core index']
  #allocation1 [shape = 'u32[144,128]{1,0:T(1,128)}', space=vmem, size = 0x12000, scoped, tag = 'internal scratch']
  %s0 = inlined_call_operand.vmem [shape: f32[16,16,18], index: 0, kind: input, shape index: {}]
  %s1 = inlined_call_operand.vmem [shape: f32[8,1,1], index: 1, kind: input, shape index: {}]
  %s2 = inlined_call_operand.vmem [shape: f32[8,1,1], index: 2, kind: input, shape index: {}]
  %s3 = inlined_call_operand.hbm [shape: f32[2,8,16,16], index: 3, kind: output, shape index: {}]
  %s4 = sld [smem:[#allocation0]]
  $region45: #{conv2d_block_forward.3} parent=0
    _
  %s6 = ssub.s32 1, %s4
  %s7 = scalar_select 0, %s6, %s4
  $region1: #{conv2d_block_forward.3} parent=0
    #allocation2 [shape = 'u8[131072]{0}', space=vmem, size = 0x20000, scoped, tag = 'output window, operand 0']
    #allocation3 [shape = 's32[2]{0}', space=sflag, size = 0x8, scoped, tag = 'scoped memory for conv2d_block_forward.3']
    %8 = vsyncpa [#allocation3], 0
    %s9 = scalar_lea.sflag [#allocation3], 1
    %10 = vsyncpa %s9, 0
    loop: start=0, step=1, limit=4
    $region2: #{conv2d_block_forward.3} parent=1 // loop_pre_header
      _
    $region3: #{conv2d_block_forward.3} parent=1 // loop_header
      %s12 = sphi 0, %s16
      %p13 = scmp.ge.s32.totalorder %s12, 4
      %s19 = sphi 0, %s31
      %s20 = sphi 0, %s27
      %s21 = sphi 0, %s19
      %s22 = sphi 0, %s20
      %s23 = sphi 0, %s21
      %s24 = sphi 0, %s22
      %s36 = sphi 0, %s38
      %s39 = sphi 0, %s36
      %s40 = sphi 0, %s39
      %s56 = sphi 0, %s40
      %s60 = sphi 0, %s60
      %s62 = sphi 0, %s60
      %s63 = sphi 0, %s62
      %s77 = sphi 0, %s63
      %s81 = sphi 0, %s81
      %s83 = sphi 0, %s81
      %s84 = sphi 0, %s83
      %s98 = sphi 0, %s84
      %s106 = sphi 0, %s108
      %s109 = sphi 0, %s106
      %s110 = sphi 0, %s109
      %s126 = sphi 0, %s110
    $region4: #{conv2d_block_forward.3} parent=1 // loop_header_branch
      %15 = sbr.rel (%p13) target = $region8
    $region5: #{conv2d_block_forward.3} parent=1 // loop_body
      %s17 = ssub.s32 %s12, 1
      %s18 = ssub.s32 %s12, 2
      %s25 = sadd.s32 1, %s20
      %p26 = scmp.ge.s32.totalorder %s25, 1
      %s27 = scalar_select %p26, 0, %s25
      %s28 = sadd.s32 1, %s19
      %s29 = scalar_select %p26, %s28, %s19
      %p30 = scmp.ge.s32.totalorder %s29, 2
      %s31 = scalar_select %p30, 0, %s29
      %s32 = sadd.s32 %s19, %s20
      %s33 = sadd.s32 %s31, %s27
      %s34 = ssub.s32 %s32, %s33
      %p35 = scmp.eq.s32.totalorder %s34, 0
      %s37 = sadd.s32 %s36, 1
      %s38 = scalar_select %p35, %s36, %s37
      %p41 = pneg %p35
      %p42 = scmp.eq.s32.totalorder %s12, 1
      %p43 = por %p41, %p42
      %p44 = scmp.ne.s32.totalorder %s36, %s39
      %p45 = scmp.eq.s32.totalorder %s12, 0
      %p46 = por %p44, %p45
      %p47 = scmp.ne.s32.totalorder %s36, %s39
      %p48 = scmp.eq.s32.totalorder %s17, 1
      %p49 = por %p47, %p48
      %p50 = scmp.ne.s32.totalorder %s39, %s40
      %p51 = scmp.eq.s32.totalorder %s17, 0
      %p52 = por %p50, %p51
      %p53 = scmp.ne.s32.totalorder %s39, %s40
      %p54 = scmp.eq.s32.totalorder %s18, 1
      %p55 = por %p53, %p54
      %p57 = scmp.ne.s32.totalorder %s40, %s56
      %p58 = scmp.eq.s32.totalorder %s18, 0
      %p59 = por %p57, %p58
      %s61 = sadd.s32 %s60, 1
      %p64 = scmp.eq.s32.totalorder %s12, 1
      %p65 = scmp.ne.s32.totalorder %s60, %s62
      %p66 = scmp.eq.s32.totalorder %s12, 0
      %p67 = por %p65, %p66
      %p68 = scmp.ne.s32.totalorder %s60, %s62
      %p69 = scmp.eq.s32.totalorder %s17, 1
      %p70 = por %p68, %p69
      %p71 = scmp.ne.s32.totalorder %s62, %s63
      %p72 = scmp.eq.s32.totalorder %s17, 0
      %p73 = por %p71, %p72
      %p74 = scmp.ne.s32.totalorder %s62, %s63
      %p75 = scmp.eq.s32.totalorder %s18, 1
      %p76 = por %p74, %p75
      %p78 = scmp.ne.s32.totalorder %s63, %s77
      %p79 = scmp.eq.s32.totalorder %s18, 0
      %p80 = por %p78, %p79
      %s82 = sadd.s32 %s81, 1
      %p85 = scmp.eq.s32.totalorder %s12, 1
      %p86 = scmp.ne.s32.totalorder %s81, %s83
      %p87 = scmp.eq.s32.totalorder %s12, 0
      %p88 = por %p86, %p87
      %p89 = scmp.ne.s32.totalorder %s81, %s83
      %p90 = scmp.eq.s32.totalorder %s17, 1
      %p91 = por %p89, %p90
      %p92 = scmp.ne.s32.totalorder %s83, %s84
      %p93 = scmp.eq.s32.totalorder %s17, 0
      %p94 = por %p92, %p93
      %p95 = scmp.ne.s32.totalorder %s83, %s84
      %p96 = scmp.eq.s32.totalorder %s18, 1
      %p97 = por %p95, %p96
      %p99 = scmp.ne.s32.totalorder %s84, %s98
      %p100 = scmp.eq.s32.totalorder %s18, 0
      %p101 = por %p99, %p100
      %s102 = ssub.s32 %s19, %s31
      %s103 = ssub.s32 %s20, %s27
      %s104 = sor.u32 %s102, %s103
      %p105 = scmp.eq.s32.totalorder %s104, 0
      %s107 = sadd.s32 %s106, 1
      %s108 = scalar_select %p105, %s106, %s107
      %p111 = pneg %p105
      %p112 = scmp.eq.s32.totalorder %s12, 1
      %p113 = por %p111, %p112
      %p114 = scmp.ne.s32.totalorder %s106, %s109
      %p115 = scmp.eq.s32.totalorder %s12, 0
      %p116 = por %p114, %p115
      %p117 = scmp.ne.s32.totalorder %s106, %s109
      %p118 = scmp.eq.s32.totalorder %s17, 1
      %p119 = por %p117, %p118
      %p120 = scmp.ne.s32.totalorder %s109, %s110
      %p121 = scmp.eq.s32.totalorder %s17, 0
      %p122 = por %p120, %p121
      %p123 = scmp.ne.s32.totalorder %s109, %s110
      %p124 = scmp.eq.s32.totalorder %s18, 1
      %p125 = por %p123, %p124
      %p127 = scmp.ne.s32.totalorder %s110, %s126
      %p128 = scmp.eq.s32.totalorder %s18, 0
      %p129 = por %p127, %p128
      %p130 = scmp.le.s32.totalorder 1, %s12
      %p131 = scmp.lt.s32.totalorder %s12, 3
      %p132 = pnand %p130, %p131
      %p133 = pneg %p132
      // Predicated region
      $region9: #{conv2d_block_forward.3} parent=5 // pred_check
        _
      $region10: #{conv2d_block_forward.3} parent=5 // pred_check_branch
        %135 = sbr.rel (%p132) target = $region12
      $region11: #{conv2d_block_forward.3} parent=5 // pred_region
        %s136 = ssub.s32 %s12, 1
        // Predicated region
        $region13: #{conv2d_block_forward.3} parent=11 // pred_check
          %p137 = pneg %p73
        $region14: #{conv2d_block_forward.3} parent=11 // pred_check_branch
          %139 = sbr.rel (%p137) target = $region16
        $region15: #{conv2d_block_forward.3} parent=11 // pred_region
          _
        $region16: #{conv2d_block_forward.3} parent=11 // pred_fallthru
          _
        // Predicated region
        $region17: #{conv2d_block_forward.3} parent=11 // pred_check
          %p140 = pneg %p94
        $region18: #{conv2d_block_forward.3} parent=11 // pred_check_branch
          %142 = sbr.rel (%p140) target = $region20
        $region19: #{conv2d_block_forward.3} parent=11 // pred_region
          _
        $region20: #{conv2d_block_forward.3} parent=11 // pred_fallthru
          _
      $region12: #{conv2d_block_forward.3} parent=5 // pred_fallthru
        _
      %p143 = scmp.lt.s32.totalorder %s12, 2
      // Predicated region
      $region21: #{conv2d_block_forward.3} parent=5 // pred_check
        %p144 = pneg %p143
      $region22: #{conv2d_block_forward.3} parent=5 // pred_check_branch
        %146 = sbr.rel (%p144) target = $region24
      $region23: #{conv2d_block_forward.3} parent=5 // pred_region
        // Predicated region
        $region25: #{conv2d_block_forward.3} parent=23 // pred_check
          %p147 = pneg %p46
        $region26: #{conv2d_block_forward.3} parent=23 // pred_check_branch
          %149 = sbr.rel (%p147) target = $region28
        $region27: #{conv2d_block_forward.3} parent=23 // pred_region
          %s150 = sadd.s32 %s19, %s20
          %s151 = smul.u32 8, %s150
          %p152 = scmp.lt.s32.totalorder %s151, 15
          %s153 = scalar_select %p152, %s151, 15
          %s154 = smul.addr %s153, 2
          %s155 = smul.addr %s154, 8
          %s156 = scalar_lea.vmem %s0, %s155
          %s157 = sadd.s32 %s19, %s20
          %s158 = smul.u32 8, %s157
        $region28: #{conv2d_block_forward.3} parent=23 // pred_fallthru
          _
      $region24: #{conv2d_block_forward.3} parent=5 // pred_fallthru
        _
      %p159 = scmp.le.s32.totalorder 1, %s12
      %p160 = scmp.lt.s32.totalorder %s12, 3
      %p161 = pnand %p159, %p160
      %p162 = pneg %p161
      // Predicated region
      $region29: #{conv2d_block_forward.3} parent=5 // pred_check
        _
      $region30: #{conv2d_block_forward.3} parent=5 // pred_check_branch
        %164 = sbr.rel (%p161) target = $region32
      $region31: #{conv2d_block_forward.3} parent=5 // pred_region
        %s165 = ssub.s32 %s12, 1
        %s166 = sadd.s32 %s21, %s22
        %s167 = smul.u32 8, %s166
        %p168 = scmp.lt.s32.totalorder %s167, 15
        %s169 = scalar_select %p168, %s167, 15
        %s170 = smul.addr %s169, 2
        %s171 = smul.addr %s170, 8
        %s172 = scalar_lea.vmem %s0, %s171
        %p173 = pneg %p52
        %p174 = pneg %p49
        %p175 = pneg %p73
        %p176 = pneg %p70
        %p177 = pneg %p94
        %p178 = pneg %p91
        %p179 = pneg %p122
        %p180 = pneg %p119
        %s181 = sand.u32 %s109, 1
        %s182 = scalar_lea.sflag [#allocation3], %s181
        %s183 = sand.u32 %s109, 1
        %s184 = smul.addr %s183, 128
        %s185 = scalar_lea.vmem [#allocation2], %s184
        %s186 = sadd.s32 %s21, %s22
        %s187 = smul.u32 8, %s186
        %p188 = scmp.lt.s32.totalorder %s187, 15
        %s189 = scalar_select %p188, %s187, 15
        %s190 = smul.addr %s189, 2
        %s191 = smul.addr %s190, 8
        %s192 = scalar_lea.vmem %s0, %s191
        %s193 = sadd.s32 %s21, %s22
        %s194 = smul.u32 8, %s193
        %s195 = smul.u32 2, %s22
        %v196 = vld [vmem:[%s192] sm:$0xff]
        %v197 = vld [vmem:[%s192 + $0x8] sm:$0xff]
        %v198 = vld [vmem:[%s192 + $0x10] sm:$0xff]
        %v199 = vld [vmem:[%s192 + $0x18] sm:$0xff]
        %v200 = vld [vmem:[%s192 + $0x20] sm:$0xff]
        %v201 = vld [vmem:[%s192 + $0x28] sm:$0xff]
        %v202 = vld [vmem:[%s192 + $0x30] sm:$0xff]
        %v203 = vld [vmem:[%s192 + $0x38] sm:$0xff]
        %v204 = vld [vmem:[%s192 + $0x40] sm:$0xff]
        %v205 = vld [vmem:[%s192 + $0x48] sm:$0xff]
        %v206 = vld [vmem:[%s192 + $0x50] sm:$0xff]
        %v207 = vld [vmem:[%s192 + $0x58] sm:$0xff]
        %v208 = vld [vmem:[%s192 + $0x60] sm:$0xff]
        %v209 = vld [vmem:[%s192 + $0x68] sm:$0xff]
        %v210 = vld [vmem:[%s192 + $0x70] sm:$0xff]
        %v211 = vld [vmem:[%s192 + $0x78] sm:$0xff]
        %v212 = vld [vmem:[%s1] sm:$0x1]
        %v213 = vld [vmem:[%s1 + $0x1] sm:$0x1]
        %v214 = vld [vmem:[%s1 + $0x2] sm:$0x1]
        %v215 = vld [vmem:[%s1 + $0x3] sm:$0x1]
        %v216 = vld [vmem:[%s1 + $0x4] sm:$0x1]
        %v217 = vld [vmem:[%s1 + $0x5] sm:$0x1]
        %v218 = vld [vmem:[%s1 + $0x6] sm:$0x1]
        %v219 = vld [vmem:[%s1 + $0x7] sm:$0x1]
        %v228 = vlaneseq
        %v229 = vshrl.u32 %v228, 7
        %v230 = vsub.s32 0, %v229
        %v231 = vrot.slane %v212, %v230
        %v232 = vlaneseq
        %v233 = vshrl.u32 %v232, 7
        %v234 = vsub.s32 0, %v233
        %v235 = vrot.slane %v213, %v234
        %v236 = vlaneseq
        %v237 = vshrl.u32 %v236, 7
        %v238 = vsub.s32 0, %v237
        %v239 = vrot.slane %v214, %v238
        %v240 = vlaneseq
        %v241 = vshrl.u32 %v240, 7
        %v242 = vsub.s32 0, %v241
        %v243 = vrot.slane %v215, %v242
        %v244 = vlaneseq
        %v245 = vshrl.u32 %v244, 7
        %v246 = vsub.s32 0, %v245
        %v247 = vrot.slane %v216, %v246
        %v248 = vlaneseq
        %v249 = vshrl.u32 %v248, 7
        %v250 = vsub.s32 0, %v249
        %v251 = vrot.slane %v217, %v250
        %v252 = vlaneseq
        %v253 = vshrl.u32 %v252, 7
        %v254 = vsub.s32 0, %v253
        %v255 = vrot.slane %v218, %v254
        %v256 = vlaneseq
        %v257 = vshrl.u32 %v256, 7
        %v258 = vsub.s32 0, %v257
        %v259 = vrot.slane %v219, %v258
        %260 = vset.pattern.permute.xlu0 0
        %261 = vperm.xlu0 %260, %v231
        %v262 = vpop.permute.xlu0 %261
        %264 = vset.pattern.permute.xlu0 0
        %265 = vperm.xlu0 %264, %v235
        %v266 = vpop.permute.xlu0 %265
        %268 = vset.pattern.permute.xlu0 0
        %269 = vperm.xlu0 %268, %v239
        %v270 = vpop.permute.xlu0 %269
        %272 = vset.pattern.permute.xlu0 0
        %273 = vperm.xlu0 %272, %v243
        %v274 = vpop.permute.xlu0 %273
        %276 = vset.pattern.permute.xlu0 0
        %277 = vperm.xlu0 %276, %v247
        %v278 = vpop.permute.xlu0 %277
        %280 = vset.pattern.permute.xlu0 0
        %281 = vperm.xlu0 %280, %v251
        %v282 = vpop.permute.xlu0 %281
        %284 = vset.pattern.permute.xlu0 0
        %285 = vperm.xlu0 %284, %v255
        %v286 = vpop.permute.xlu0 %285
        %288 = vset.pattern.permute.xlu0 0
        %289 = vperm.xlu0 %288, %v259
        %v290 = vpop.permute.xlu0 %289
        %v292 = vmul.f32 %v196, %v262
        %v293 = vmul.f32 %v197, %v262
        %v294 = vmul.f32 %v198, %v266
        %v295 = vmul.f32 %v199, %v266
        %v296 = vmul.f32 %v200, %v270
        %v297 = vmul.f32 %v201, %v270
        %v298 = vmul.f32 %v202, %v274
        %v299 = vmul.f32 %v203, %v274
        %v300 = vmul.f32 %v204, %v278
        %v301 = vmul.f32 %v205, %v278
        %v302 = vmul.f32 %v206, %v282
        %v303 = vmul.f32 %v207, %v282
        %v304 = vmul.f32 %v208, %v286
        %v305 = vmul.f32 %v209, %v286
        %v306 = vmul.f32 %v210, %v290
        %v307 = vmul.f32 %v211, %v290
        %v308 = vld [vmem:[%s2] sm:$0x1]
        %v309 = vld [vmem:[%s2 + $0x1] sm:$0x1]
        %v310 = vld [vmem:[%s2 + $0x2] sm:$0x1]
        %v311 = vld [vmem:[%s2 + $0x3] sm:$0x1]
        %v312 = vld [vmem:[%s2 + $0x4] sm:$0x1]
        %v313 = vld [vmem:[%s2 + $0x5] sm:$0x1]
        %v314 = vld [vmem:[%s2 + $0x6] sm:$0x1]
        %v315 = vld [vmem:[%s2 + $0x7] sm:$0x1]
        %v324 = vlaneseq
        %v325 = vshrl.u32 %v324, 7
        %v326 = vsub.s32 0, %v325
        %v327 = vrot.slane %v308, %v326
        %v328 = vlaneseq
        %v329 = vshrl.u32 %v328, 7
        %v330 = vsub.s32 0, %v329
        %v331 = vrot.slane %v309, %v330
        %v332 = vlaneseq
        %v333 = vshrl.u32 %v332, 7
        %v334 = vsub.s32 0, %v333
        %v335 = vrot.slane %v310, %v334
        %v336 = vlaneseq
        %v337 = vshrl.u32 %v336, 7
        %v338 = vsub.s32 0, %v337
        %v339 = vrot.slane %v311, %v338
        %v340 = vlaneseq
        %v341 = vshrl.u32 %v340, 7
        %v342 = vsub.s32 0, %v341
        %v343 = vrot.slane %v312, %v342
        %v344 = vlaneseq
        %v345 = vshrl.u32 %v344, 7
        %v346 = vsub.s32 0, %v345
        %v347 = vrot.slane %v313, %v346
        %v348 = vlaneseq
        %v349 = vshrl.u32 %v348, 7
        %v350 = vsub.s32 0, %v349
        %v351 = vrot.slane %v314, %v350
        %v352 = vlaneseq
        %v353 = vshrl.u32 %v352, 7
        %v354 = vsub.s32 0, %v353
        %v355 = vrot.slane %v315, %v354
        %356 = vset.pattern.permute.xlu0 0
        %357 = vperm.xlu0 %356, %v327
        %v358 = vpop.permute.xlu0 %357
        %360 = vset.pattern.permute.xlu0 0
        %361 = vperm.xlu0 %360, %v331
        %v362 = vpop.permute.xlu0 %361
        %364 = vset.pattern.permute.xlu0 0
        %365 = vperm.xlu0 %364, %v335
        %v366 = vpop.permute.xlu0 %365
        %368 = vset.pattern.permute.xlu0 0
        %369 = vperm.xlu0 %368, %v339
        %v370 = vpop.permute.xlu0 %369
        %372 = vset.pattern.permute.xlu0 0
        %373 = vperm.xlu0 %372, %v343
        %v374 = vpop.permute.xlu0 %373
        %376 = vset.pattern.permute.xlu0 0
        %377 = vperm.xlu0 %376, %v347
        %v378 = vpop.permute.xlu0 %377
        %380 = vset.pattern.permute.xlu0 0
        %381 = vperm.xlu0 %380, %v351
        %v382 = vpop.permute.xlu0 %381
        %384 = vset.pattern.permute.xlu0 0
        %385 = vperm.xlu0 %384, %v355
        %v386 = vpop.permute.xlu0 %385
        %v388 = vadd.f32 %v292, %v358
        %v389 = vadd.f32 %v293, %v358
        %v390 = vadd.f32 %v294, %v362
        %v391 = vadd.f32 %v295, %v362
        %v392 = vadd.f32 %v296, %v366
        %v393 = vadd.f32 %v297, %v366
        %v394 = vadd.f32 %v298, %v370
        %v395 = vadd.f32 %v299, %v370
        %v396 = vadd.f32 %v300, %v374
        %v397 = vadd.f32 %v301, %v374
        %v398 = vadd.f32 %v302, %v378
        %v399 = vadd.f32 %v303, %v378
        %v400 = vadd.f32 %v304, %v382
        %v401 = vadd.f32 %v305, %v382
        %v402 = vadd.f32 %v306, %v386
        %v403 = vadd.f32 %v307, %v386
        %v404 = vmax.f32 %v388, 0.0
        %v405 = vmax.f32 %v389, 0.0
        %v406 = vmax.f32 %v390, 0.0
        %v407 = vmax.f32 %v391, 0.0
        %v408 = vmax.f32 %v392, 0.0
        %v409 = vmax.f32 %v393, 0.0
        %v410 = vmax.f32 %v394, 0.0
        %v411 = vmax.f32 %v395, 0.0
        %v412 = vmax.f32 %v396, 0.0
        %v413 = vmax.f32 %v397, 0.0
        %v414 = vmax.f32 %v398, 0.0
        %v415 = vmax.f32 %v399, 0.0
        %v416 = vmax.f32 %v400, 0.0
        %v417 = vmax.f32 %v401, 0.0
        %v418 = vmax.f32 %v402, 0.0
        %v419 = vmax.f32 %v403, 0.0
        %vm420 = vcmask 130048
        %421 = vst.msk [vmem:[%s185] sm:$0xff] %vm420, %v404
        %422 = vst.msk [vmem:[%s185 + $0x8] sm:$0xff] %vm420, %v405
        %423 = vst.msk [vmem:[%s185 + $0x10] sm:$0xff] %vm420, %v406
        %424 = vst.msk [vmem:[%s185 + $0x18] sm:$0xff] %vm420, %v407
        %425 = vst.msk [vmem:[%s185 + $0x20] sm:$0xff] %vm420, %v408
        %426 = vst.msk [vmem:[%s185 + $0x28] sm:$0xff] %vm420, %v409
        %427 = vst.msk [vmem:[%s185 + $0x30] sm:$0xff] %vm420, %v410
        %428 = vst.msk [vmem:[%s185 + $0x38] sm:$0xff] %vm420, %v411
        %429 = vst.msk [vmem:[%s185 + $0x40] sm:$0xff] %vm420, %v412
        %430 = vst.msk [vmem:[%s185 + $0x48] sm:$0xff] %vm420, %v413
        %431 = vst.msk [vmem:[%s185 + $0x50] sm:$0xff] %vm420, %v414
        %432 = vst.msk [vmem:[%s185 + $0x58] sm:$0xff] %vm420, %v415
        %433 = vst.msk [vmem:[%s185 + $0x60] sm:$0xff] %vm420, %v416
        %434 = vst.msk [vmem:[%s185 + $0x68] sm:$0xff] %vm420, %v417
        %435 = vst.msk [vmem:[%s185 + $0x70] sm:$0xff] %vm420, %v418
        %436 = vst.msk [vmem:[%s185 + $0x78] sm:$0xff] %vm420, %v419
        %s437 = sand.u32 %s109, 1
        %s438 = scalar_lea.sflag [#allocation3], %s437
        %s439 = sand.u32 %s109, 1
        %s440 = smul.addr %s439, 128
        %s441 = scalar_lea.vmem [#allocation2], %s440
        // Predicated region
        $region33: #{conv2d_block_forward.3} parent=31 // pred_check
          %p442 = pneg %p119
        $region34: #{conv2d_block_forward.3} parent=31 // pred_check_branch
          %444 = sbr.rel (%p442) target = $region36
        $region35: #{conv2d_block_forward.3} parent=31 // pred_region
          %s445 = smul.u32 2, %s22
          %s447 = ssub.s32 2048, 2048
          %448 = vsyncadd %s438, %s447
          %s449 = smul.addr %s21, 16
          %s450 = sadd.s32 %s445, %s449
          %s451 = smul.addr %s450, 128
          %s452 = scalar_lea.hbm %s3, %s451
          %s453 = sshll.u32 %s441, 4
          %s454 = int_to_ptr.vmem [resolvable:$true] %s453
          %459 = dma.vmem_to_hbm [thread:$0]  %s454, 2048, %s452, %s438, 128, 128, 8
        $region36: #{conv2d_block_forward.3} parent=31 // pred_fallthru
          _
      $region32: #{conv2d_block_forward.3} parent=5 // pred_fallthru
        _
      %p460 = scmp.le.s32.totalorder 2, %s12
      // Predicated region
      $region37: #{conv2d_block_forward.3} parent=5 // pred_check
        %p461 = pneg %p460
      $region38: #{conv2d_block_forward.3} parent=5 // pred_check_branch
        %463 = sbr.rel (%p461) target = $region40
      $region39: #{conv2d_block_forward.3} parent=5 // pred_region
        %s464 = ssub.s32 %s12, 2
        // Predicated region
        $region41: #{conv2d_block_forward.3} parent=39 // pred_check
          %p465 = pneg %p125
        $region42: #{conv2d_block_forward.3} parent=39 // pred_check_branch
          %467 = sbr.rel (%p465) target = $region44
        $region43: #{conv2d_block_forward.3} parent=39 // pred_region
          %s468 = sand.u32 %s110, 1
          %s469 = scalar_lea.sflag [#allocation3], %s468
          %s470 = sand.u32 %s110, 1
          %s471 = smul.addr %s470, 128
          %s472 = scalar_lea.vmem [#allocation2], %s471
          %473 = dma.done %s469, 2048
        $region44: #{conv2d_block_forward.3} parent=39 // pred_fallthru
          _
      $region40: #{conv2d_block_forward.3} parent=5 // pred_fallthru
        _
    $region6: #{conv2d_block_forward.3} parent=1 // loop_footer
      %s16 = sadd.s32 1, %s12
    $region7: #{conv2d_block_forward.3} parent=1 // loop_footer_branch
      %11 = sbr.rel target = $region3
    $region8: #{conv2d_block_forward.3} parent=1 // loop_exit
      _
    %474 = vsyncpa [#allocation3], 1
    %s475 = scalar_lea.sflag [#allocation3], 1
    %476 = vsyncpa %s475, 1

// kernel: conv2d_block_forward.2
$region0: #{conv2d_block_forward.2}
  #allocation0 [shape = 'u32[]', space=smem, size = 0x4, offset = 0x4, fixed_abs, tag = 'smem constant byte address 0x4 - core index']
  #allocation1 [shape = 'u32[144,128]{1,0:T(1,128)}', space=vmem, size = 0x12000, scoped, tag = 'internal scratch']
  %s0 = inlined_call_operand.vmem [shape: f32[2,1,4,326], index: 0, kind: input, shape index: {}]
  %s1 = inlined_call_operand.vmem [shape: f32[8,36], index: 1, kind: input, shape index: {}]
  %s2 = inlined_call_operand.vmem [shape: f32[2,1,8,288], index: 2, kind: output, shape index: {0}]
  %s3 = inlined_call_operand.vmem [shape: f32[2,1,8,2], index: 3, kind: output, shape index: {1}]
  %4 = xla_tuple %s2, %s3
  %s5 = sld [smem:[#allocation0]]
  $region49: #{conv2d_block_forward.2} parent=0
    _
  %s7 = ssub.s32 1, %s5
  %s8 = scalar_select 0, %s7, %s5
  loop: start=0, step=1, limit=4
  $region2: #{conv2d_block_forward.2} parent=0 // loop_pre_header
    _
  $region3: #{conv2d_block_forward.2} parent=0 // loop_header
    %s10 = sphi 0, %s14
    %p11 = scmp.ge.s32.totalorder %s10, 4
    %s17 = sphi 0, %s29
    %s18 = sphi 0, %s25
    %s19 = sphi 0, %s17
    %s20 = sphi 0, %s18
    %s21 = sphi 0, %s19
    %s22 = sphi 0, %s20
    %s34 = sphi 0, %s36
    %s37 = sphi 0, %s34
    %s38 = sphi 0, %s37
    %s54 = sphi 0, %s38
    %s58 = sphi 0, %s58
    %s60 = sphi 0, %s58
    %s61 = sphi 0, %s60
    %s75 = sphi 0, %s61
    %s83 = sphi 0, %s85
    %s86 = sphi 0, %s83
    %s87 = sphi 0, %s86
    %s103 = sphi 0, %s87
    %s111 = sphi 0, %s113
    %s114 = sphi 0, %s111
    %s115 = sphi 0, %s114
    %s131 = sphi 0, %s115
  $region4: #{conv2d_block_forward.2} parent=0 // loop_header_branch
    %13 = sbr.rel (%p11) target = $region8
  $region5: #{conv2d_block_forward.2} parent=0 // loop_body
    %s15 = ssub.s32 %s10, 1
    %s16 = ssub.s32 %s10, 2
    %s23 = sadd.s32 1, %s18
    %p24 = scmp.ge.s32.totalorder %s23, 1
    %s25 = scalar_select %p24, 0, %s23
    %s26 = sadd.s32 1, %s17
    %s27 = scalar_select %p24, %s26, %s17
    %p28 = scmp.ge.s32.totalorder %s27, 2
    %s29 = scalar_select %p28, 0, %s27
    %s30 = ssub.s32 %s17, %s29
    %s31 = ssub.s32 %s18, %s25
    %s32 = sor.u32 %s30, %s31
    %p33 = scmp.eq.s32.totalorder %s32, 0
    %s35 = sadd.s32 %s34, 1
    %s36 = scalar_select %p33, %s34, %s35
    %p39 = pneg %p33
    %p40 = scmp.eq.s32.totalorder %s10, 1
    %p41 = por %p39, %p40
    %p42 = scmp.ne.s32.totalorder %s34, %s37
    %p43 = scmp.eq.s32.totalorder %s10, 0
    %p44 = por %p42, %p43
    %p45 = scmp.ne.s32.totalorder %s34, %s37
    %p46 = scmp.eq.s32.totalorder %s15, 1
    %p47 = por %p45, %p46
    %p48 = scmp.ne.s32.totalorder %s37, %s38
    %p49 = scmp.eq.s32.totalorder %s15, 0
    %p50 = por %p48, %p49
    %p51 = scmp.ne.s32.totalorder %s37, %s38
    %p52 = scmp.eq.s32.totalorder %s16, 1
    %p53 = por %p51, %p52
    %p55 = scmp.ne.s32.totalorder %s38, %s54
    %p56 = scmp.eq.s32.totalorder %s16, 0
    %p57 = por %p55, %p56
    %s59 = sadd.s32 %s58, 1
    %p62 = scmp.eq.s32.totalorder %s10, 1
    %p63 = scmp.ne.s32.totalorder %s58, %s60
    %p64 = scmp.eq.s32.totalorder %s10, 0
    %p65 = por %p63, %p64
    %p66 = scmp.ne.s32.totalorder %s58, %s60
    %p67 = scmp.eq.s32.totalorder %s15, 1
    %p68 = por %p66, %p67
    %p69 = scmp.ne.s32.totalorder %s60, %s61
    %p70 = scmp.eq.s32.totalorder %s15, 0
    %p71 = por %p69, %p70
    %p72 = scmp.ne.s32.totalorder %s60, %s61
    %p73 = scmp.eq.s32.totalorder %s16, 1
    %p74 = por %p72, %p73
    %p76 = scmp.ne.s32.totalorder %s61, %s75
    %p77 = scmp.eq.s32.totalorder %s16, 0
    %p78 = por %p76, %p77
    %s79 = ssub.s32 %s17, %s29
    %s80 = ssub.s32 %s18, %s25
    %s81 = sor.u32 %s79, %s80
    %p82 = scmp.eq.s32.totalorder %s81, 0
    %s84 = sadd.s32 %s83, 1
    %s85 = scalar_select %p82, %s83, %s84
    %p88 = pneg %p82
    %p89 = scmp.eq.s32.totalorder %s10, 1
    %p90 = por %p88, %p89
    %p91 = scmp.ne.s32.totalorder %s83, %s86
    %p92 = scmp.eq.s32.totalorder %s10, 0
    %p93 = por %p91, %p92
    %p94 = scmp.ne.s32.totalorder %s83, %s86
    %p95 = scmp.eq.s32.totalorder %s15, 1
    %p96 = por %p94, %p95
    %p97 = scmp.ne.s32.totalorder %s86, %s87
    %p98 = scmp.eq.s32.totalorder %s15, 0
    %p99 = por %p97, %p98
    %p100 = scmp.ne.s32.totalorder %s86, %s87
    %p101 = scmp.eq.s32.totalorder %s16, 1
    %p102 = por %p100, %p101
    %p104 = scmp.ne.s32.totalorder %s87, %s103
    %p105 = scmp.eq.s32.totalorder %s16, 0
    %p106 = por %p104, %p105
    %s107 = ssub.s32 %s17, %s29
    %s108 = ssub.s32 %s18, %s25
    %s109 = sor.u32 %s107, %s108
    %p110 = scmp.eq.s32.totalorder %s109, 0
    %s112 = sadd.s32 %s111, 1
    %s113 = scalar_select %p110, %s111, %s112
    %p116 = pneg %p110
    %p117 = scmp.eq.s32.totalorder %s10, 1
    %p118 = por %p116, %p117
    %p119 = scmp.ne.s32.totalorder %s111, %s114
    %p120 = scmp.eq.s32.totalorder %s10, 0
    %p121 = por %p119, %p120
    %p122 = scmp.ne.s32.totalorder %s111, %s114
    %p123 = scmp.eq.s32.totalorder %s15, 1
    %p124 = por %p122, %p123
    %p125 = scmp.ne.s32.totalorder %s114, %s115
    %p126 = scmp.eq.s32.totalorder %s15, 0
    %p127 = por %p125, %p126
    %p128 = scmp.ne.s32.totalorder %s114, %s115
    %p129 = scmp.eq.s32.totalorder %s16, 1
    %p130 = por %p128, %p129
    %p132 = scmp.ne.s32.totalorder %s115, %s131
    %p133 = scmp.eq.s32.totalorder %s16, 0
    %p134 = por %p132, %p133
    %p135 = scmp.le.s32.totalorder 1, %s10
    %p136 = scmp.lt.s32.totalorder %s10, 3
    %p137 = pnand %p135, %p136
    %p138 = pneg %p137
    // Predicated region
    $region9: #{conv2d_block_forward.2} parent=5 // pred_check
      _
    $region10: #{conv2d_block_forward.2} parent=5 // pred_check_branch
      %140 = sbr.rel (%p137) target = $region12
    $region11: #{conv2d_block_forward.2} parent=5 // pred_region
      %s141 = ssub.s32 %s10, 1
      // Predicated region
      $region13: #{conv2d_block_forward.2} parent=11 // pred_check
        %p142 = pneg %p71
      $region14: #{conv2d_block_forward.2} parent=11 // pred_check_branch
        %144 = sbr.rel (%p142) target = $region16
      $region15: #{conv2d_block_forward.2} parent=11 // pred_region
        _
      $region16: #{conv2d_block_forward.2} parent=11 // pred_fallthru
        _
    $region12: #{conv2d_block_forward.2} parent=5 // pred_fallthru
      _
    %p145 = scmp.lt.s32.totalorder %s10, 2
    // Predicated region
    $region17: #{conv2d_block_forward.2} parent=5 // pred_check
      %p146 = pneg %p145
    $region18: #{conv2d_block_forward.2} parent=5 // pred_check_branch
      %148 = sbr.rel (%p146) target = $region20
    $region19: #{conv2d_block_forward.2} parent=5 // pred_region
      // Predicated region
      $region21: #{conv2d_block_forward.2} parent=19 // pred_check
        %p149 = pneg %p44
      $region22: #{conv2d_block_forward.2} parent=19 // pred_check_branch
        %151 = sbr.rel (%p149) target = $region24
      $region23: #{conv2d_block_forward.2} parent=19 // pred_region
        %p152 = scmp.lt.s32.totalorder %s17, 1
        %s153 = scalar_select %p152, %s17, 1
        %p154 = scmp.lt.s32.totalorder %s18, 0
        %s155 = scalar_select %p154, %s18, 0
        %s156 = smul.addr %s155, 3
        %s157 = smul.addr %s153, 3
        %s158 = sadd.s32 %s156, %s157
        %s159 = smul.addr %s158, 4
        %s160 = scalar_lea.vmem %s0, %s159
      $region24: #{conv2d_block_forward.2} parent=19 // pred_fallthru
        _
    $region20: #{conv2d_block_forward.2} parent=5 // pred_fallthru
      _
    %p161 = scmp.le.s32.totalorder 1, %s10
    %p162 = scmp.lt.s32.totalorder %s10, 3
    %p163 = pnand %p161, %p162
    %p164 = pneg %p163
    // Predicated region
    $region25: #{conv2d_block_forward.2} parent=5 // pred_check
      _
    $region26: #{conv2d_block_forward.2} parent=5 // pred_check_branch
      %166 = sbr.rel (%p163) target = $region28
    $region27: #{conv2d_block_forward.2} parent=5 // pred_region
      %s167 = ssub.s32 %s10, 1
      %p168 = scmp.lt.s32.totalorder %s19, 1
      %s169 = scalar_select %p168, %s19, 1
      %p170 = scmp.lt.s32.totalorder %s20, 0
      %s171 = scalar_select %p170, %s20, 0
      %s172 = smul.addr %s171, 3
      %s173 = smul.addr %s169, 3
      %s174 = sadd.s32 %s172, %s173
      %s175 = smul.addr %s174, 4
      %s176 = scalar_lea.vmem %s0, %s175
      %p177 = pneg %p50
      %p178 = pneg %p47
      %p179 = pneg %p71
      %p180 = pneg %p68
      %p181 = pneg %p99
      %p182 = pneg %p96
      %p183 = scmp.lt.s32.totalorder %s19, 1
      %s184 = scalar_select %p183, %s19, 1
      %p185 = scmp.lt.s32.totalorder %s20, 0
      %s186 = scalar_select %p185, %s20, 0
      %s187 = smul.addr %s186, 3
      %s188 = smul.addr %s184, 3
      %s189 = sadd.s32 %s187, %s188
      %s190 = smul.addr %s189, 8
      %s191 = scalar_lea.vmem %s2, %s190
      %p192 = pneg %p127
      %p193 = pneg %p124
      %p194 = scmp.lt.s32.totalorder %s19, 1
      %s195 = scalar_select %p194, %s19, 1
      %p196 = scmp.lt.s32.totalorder %s20, 0
      %s197 = scalar_select %p196, %s20, 0
      %s198 = sadd.s32 %s197, %s195
      %s199 = smul.addr %s198, 8
      %s200 = scalar_lea.vmem %s3, %s199
      %p201 = scmp.lt.s32.totalorder %s19, 1
      %s202 = scalar_select %p201, %s19, 1
      %p203 = scmp.lt.s32.totalorder %s20, 0
      %s204 = scalar_select %p203, %s20, 0
      %s205 = smul.addr %s204, 3
      %s206 = smul.addr %s202, 3
      %s207 = sadd.s32 %s205, %s206
      %s208 = smul.addr %s207, 4
      %s209 = scalar_lea.vmem %s0, %s208
      %p210 = scmp.lt.s32.totalorder %s19, 1
      %s211 = scalar_select %p210, %s19, 1
      %p212 = scmp.lt.s32.totalorder %s20, 0
      %s213 = scalar_select %p212, %s20, 0
      %s214 = smul.addr %s213, 3
      %s215 = smul.addr %s211, 3
      %s216 = sadd.s32 %s214, %s215
      %s217 = smul.addr %s216, 8
      %s218 = scalar_lea.vmem %s2, %s217
      %p219 = scmp.lt.s32.totalorder %s19, 1
      %s220 = scalar_select %p219, %s19, 1
      %p221 = scmp.lt.s32.totalorder %s20, 0
      %s222 = scalar_select %p221, %s20, 0
      %s223 = sadd.s32 %s222, %s220
      %s224 = smul.addr %s223, 8
      %s225 = scalar_lea.vmem %s3, %s224
      %v226 = vld [vmem:[%s209] sm:$0xff]
      %v227 = vld [vmem:[%s209 + $0x8] sm:$0xf]
      %v230 = vcombine.high %v226, %v226
      %v232 = vcombine.low %v226, %v226
      %v233 = vcombine.low %v227, %v227
      %234 = vrot.lane.b32.xlu0 %v232, 127
      %v235 = vpop.permute.xlu0 %234
      %236 = vrot.lane.b32.xlu0 %v226, 127
      %v237 = vpop.permute.xlu0 %236
      %238 = vrot.lane.b32.xlu0 %v233, 127
      %v239 = vpop.permute.xlu0 %238
      %vm240 = vcmask 1039360
      %v241 = vsel %vm240, %v235, %v237
      %v242 = vsel %vm240, %v237, %v239
      %246 = vrot.lane.b32.xlu0 %v226, 126
      %v247 = vpop.permute.xlu0 %246
      %248 = vrot.lane.b32.xlu0 %v230, 126
      %v249 = vpop.permute.xlu0 %248
      %250 = vrot.lane.b32.xlu0 %v227, 126
      %v251 = vpop.permute.xlu0 %250
      %vm252 = vcmask 1031168
      %v253 = vsel %vm252, %v247, %v249
      %v254 = vsel %vm252, %v249, %v251
      %258 = vrot.lane.b32.xlu0 %v232, 110
      %v259 = vpop.permute.xlu0 %258
      %260 = vrot.lane.b32.xlu0 %v226, 110
      %v261 = vpop.permute.xlu0 %260
      %262 = vrot.lane.b32.xlu0 %v233, 110
      %v263 = vpop.permute.xlu0 %262
      %vm264 = vcmask 900096
      %v265 = vsel %vm264, %v259, %v261
      %v266 = vsel %vm264, %v261, %v263
      %270 = vrot.lane.b32.xlu0 %v226, 109
      %v271 = vpop.permute.xlu0 %270
      %272 = vrot.lane.b32.xlu0 %v230, 109
      %v273 = vpop.permute.xlu0 %272
      %274 = vrot.lane.b32.xlu0 %v227, 109
      %v275 = vpop.permute.xlu0 %274
      %vm276 = vcmask 891904
      %v277 = vsel %vm276, %v271, %v273
      %v278 = vsel %vm276, %v273, %v275
      %282 = vrot.lane.b32.xlu0 %v232, 108
      %v283 = vpop.permute.xlu0 %282
      %284 = vrot.lane.b32.xlu0 %v226, 108
      %v285 = vpop.permute.xlu0 %284
      %286 = vrot.lane.b32.xlu0 %v233, 108
      %v287 = vpop.permute.xlu0 %286
      %vm288 = vcmask 883712
      %v289 = vsel %vm288, %v283, %v285
      %v290 = vsel %vm288, %v285, %v287
      %294 = vrot.lane.b32.xlu0 %v226, 92
      %v295 = vpop.permute.xlu0 %294
      %296 = vrot.lane.b32.xlu0 %v230, 92
      %v297 = vpop.permute.xlu0 %296
      %298 = vrot.lane.b32.xlu0 %v227, 92
      %v299 = vpop.permute.xlu0 %298
      %vm300 = vcmask 752640
      %v301 = vsel %vm300, %v295, %v297
      %v302 = vsel %vm300, %v297, %v299
      %306 = vrot.lane.b32.xlu0 %v232, 91
      %v307 = vpop.permute.xlu0 %306
      %308 = vrot.lane.b32.xlu0 %v226, 91
      %v309 = vpop.permute.xlu0 %308
      %310 = vrot.lane.b32.xlu0 %v233, 91
      %v311 = vpop.permute.xlu0 %310
      %vm312 = vcmask 744448
      %v313 = vsel %vm312, %v307, %v309
      %v314 = vsel %vm312, %v309, %v311
      %318 = vrot.lane.b32.xlu0 %v226, 90
      %v319 = vpop.permute.xlu0 %318
      %320 = vrot.lane.b32.xlu0 %v230, 90
      %v321 = vpop.permute.xlu0 %320
      %322 = vrot.lane.b32.xlu0 %v227, 90
      %v323 = vpop.permute.xlu0 %322
      %vm324 = vcmask 736256
      %v325 = vsel %vm324, %v319, %v321
      %v326 = vsel %vm324, %v321, %v323
      %vm327 = vcmask 1043456
      %v328 = vsel %vm327, %v226, %v241
      %v329 = vsel %vm327, %v230, %v242
      %v330 = vsel %vm327, %v227, %v239
      %v331 = vsel %vm327, %v253, %v265
      %v332 = vsel %vm327, %v254, %v266
      %v333 = vsel %vm327, %v251, %v263
      %v334 = vsel %vm327, %v277, %v289
      %v335 = vsel %vm327, %v278, %v290
      %v336 = vsel %vm327, %v275, %v287
      %v337 = vsel %vm327, %v301, %v313
      %v338 = vsel %vm327, %v302, %v314
      %v339 = vsel %vm327, %v299, %v311
      %v340 = vld [vmem:[%s1] sm:$0xff]
      %vm341 = vcmask 293888
      %v343 = vsel %vm341, %v340, 0
      %v345 = vsel %vm327, %v325, 0
      %v347 = vsel %vm327, %v326, 0
      %v349 = vsel %vm327, %v323, 0
      %351 = vmatprep.subr.mxu0 0.0
      %352 = vmatpush1.msra.mxu0 0.0
      %353 = vmatprep.subr.mxu0 0.0
      %354 = vmatpush1.msra.mxu0 0.0
      %355 = vmatprep.subr.mxu0 0.0
      %356 = vmatpush1.msra.mxu0 0.0
      %357 = vmatprep.subr.mxu0 0.0
      %358 = vmatpush1.msra.mxu0 0.0
      %359 = vmatprep.subr.mxu0 0.0
      %360 = vmatpush1.msra.mxu0 0.0
      %361 = vmatprep.subr.mxu0 0.0
      %362 = vmatpush1.msra.mxu0 0.0
      %363 = vmatprep.subr.mxu0 0.0
      %364 = vmatpush1.msra.mxu0 0.0
      %365 = vmatprep.subr.mxu0 0.0
      %366 = vmatpush1.msra.mxu0 0.0
      %367 = vmatprep.subr.mxu0 0.0
      %368 = vmatpush1.msra.mxu0 0.0
      %369 = vmatprep.subr.mxu0 0.0
      %370 = vmatpush1.msra.mxu0 0.0
      %371 = vmatprep.subr.mxu0 0.0
      %372 = vmatpush1.msra.mxu0 0.0
      %v373 = vand.u32 %v347, 4294901760
      %374 = vmatprep.subr.mxu0 %v373
      %v375 = vand.u32 %v345, 4294901760
      %376 = vmatpush1.msra.mxu0 %v375
      %v377 = vand.u32 %v338, 4294901760
      %378 = vmatprep.subr.mxu0 %v377
      %v379 = vand.u32 %v337, 4294901760
      %380 = vmatpush1.msra.mxu0 %v379
      %v381 = vand.u32 %v335, 4294901760
      %382 = vmatprep.subr.mxu0 %v381
      %v383 = vand.u32 %v334, 4294901760
      %384 = vmatpush1.msra.mxu0 %v383
      %v385 = vand.u32 %v332, 4294901760
      %386 = vmatprep.subr.mxu0 %v385
      %v387 = vand.u32 %v331, 4294901760
      %388 = vmatpush1.msra.mxu0 %v387
      %v389 = vand.u32 %v329, 4294901760
      %390 = vmatprep.subr.mxu0 %v389
      %v391 = vand.u32 %v328, 4294901760
      %392 = vmatpush1.msra.mxu0 %v391
      %393 = vmatprep.subr.mxu0 0.0
      %394 = vmatpush2.msra.mxu0 0.0
      %395 = vmatprep.subr.mxu0 0.0
      %396 = vmatpush2.msra.mxu0 0.0
      %397 = vmatprep.subr.mxu0 0.0
      %398 = vmatpush2.msra.mxu0 0.0
      %399 = vmatprep.subr.mxu0 0.0
      %400 = vmatpush2.msra.mxu0 0.0
      %401 = vmatprep.subr.mxu0 0.0
      %402 = vmatpush2.msra.mxu0 0.0
      %403 = vmatprep.subr.mxu0 0.0
      %404 = vmatpush2.msra.mxu0 0.0
      %405 = vmatprep.subr.mxu0 0.0
      %406 = vmatpush2.msra.mxu0 0.0
      %407 = vmatprep.subr.mxu0 0.0
      %408 = vmatpush2.msra.mxu0 0.0
      %409 = vmatprep.subr.mxu0 0.0
      %410 = vmatpush2.msra.mxu0 0.0
      %411 = vmatprep.subr.mxu0 0.0
      %412 = vmatpush2.msra.mxu0 0.0
      %413 = vmatprep.subr.mxu0 0.0
      %414 = vmatpush2.msra.mxu0 0.0
      %415 = vmatprep.subr.mxu0 0.0
      %416 = vmatpush2.msra.mxu0 0.0
      %417 = vmatprep.subr.mxu0 0.0
      %418 = vmatpush2.msra.mxu0 0.0
      %419 = vmatprep.subr.mxu0 0.0
      %420 = vmatpush2.msra.mxu0 0.0
      %421 = vmatprep.subr.mxu0 0.0
      %422 = vmatpush2.msra.mxu0 0.0
      %423 = vmatprep.subr.mxu0 0.0
      %424 = vmatpush2.msra.mxu0 0.0
      %425 = vmatprep.mubr.f32.mxu0 0.0
      %v426 = vand.u32 %v343, 4294901760
      %v427 = vsub.f32 %v343, %v426
      %v428 = vand.u32 %v427, 4294901760
      %v429 = vsub.f32 %v427, %v428
      %v430 = vand.u32 %v429, 4294901760
      %431 = vmatmul.mubr.f32.gmra.mxu0 %v430
      %v432 = vpop.f32.mrf.mxu0
      %v433 = vadd.f32 0.0, %v432
      %v434 = vpop.f32.mrf.mxu0
      %v435 = vadd.f32 0.0, %v434
      %436 = vdwg.mxu0
      %437 = vmatprep.subr.mxu0 0.0
      %438 = vmatpush1.msra.mxu0 0.0
      %439 = vmatprep.subr.mxu0 0.0
      %440 = vmatpush1.msra.mxu0 0.0
      %441 = vmatprep.subr.mxu0 0.0
      %442 = vmatpush1.msra.mxu0 0.0
      %443 = vmatprep.subr.mxu0 0.0
      %444 = vmatpush1.msra.mxu0 0.0
      %445 = vmatprep.subr.mxu0 0.0
      %446 = vmatpush1.msra.mxu0 0.0
      %447 = vmatprep.subr.mxu0 0.0
      %448 = vmatpush1.msra.mxu0 0.0
      %449 = vmatprep.subr.mxu0 0.0
      %450 = vmatpush1.msra.mxu0 0.0
      %451 = vmatprep.subr.mxu0 0.0
      %452 = vmatpush1.msra.mxu0 0.0
      %453 = vmatprep.subr.mxu0 0.0
      %454 = vmatpush1.msra.mxu0 0.0
      %455 = vmatprep.subr.mxu0 0.0
      %456 = vmatpush1.msra.mxu0 0.0
      %457 = vmatprep.subr.mxu0 0.0
      %458 = vmatpush1.msra.mxu0 0.0
      %v459 = vand.u32 %v347, 4294901760
      %v460 = vsub.f32 %v347, %v459
      %v461 = vand.u32 %v460, 4294901760
      %v462 = vsub.f32 %v460, %v461
      %v463 = vand.u32 %v462, 4294901760
      %464 = vmatprep.subr.mxu0 %v463
      %v465 = vand.u32 %v345, 4294901760
      %v466 = vsub.f32 %v345, %v465
      %v467 = vand.u32 %v466, 4294901760
      %v468 = vsub.f32 %v466, %v467
      %v469 = vand.u32 %v468, 4294901760
      %470 = vmatpush1.msra.mxu0 %v469
      %v471 = vand.u32 %v338, 4294901760
      %v472 = vsub.f32 %v338, %v471
      %v473 = vand.u32 %v472, 4294901760
      %v474 = vsub.f32 %v472, %v473
      %v475 = vand.u32 %v474, 4294901760
      %476 = vmatprep.subr.mxu0 %v475
      %v477 = vand.u32 %v337, 4294901760
      %v478 = vsub.f32 %v337, %v477
      %v479 = vand.u32 %v478, 4294901760
      %v480 = vsub.f32 %v478, %v479
      %v481 = vand.u32 %v480, 4294901760
      %482 = vmatpush1.msra.mxu0 %v481
      %v483 = vand.u32 %v335, 4294901760
      %v484 = vsub.f32 %v335, %v483
      %v485 = vand.u32 %v484, 4294901760
      %v486 = vsub.f32 %v484, %v485
      %v487 = vand.u32 %v486, 4294901760
      %488 = vmatprep.subr.mxu0 %v487
      %v489 = vand.u32 %v334, 4294901760
      %v490 = vsub.f32 %v334, %v489
      %v491 = vand.u32 %v490, 4294901760
      %v492 = vsub.f32 %v490, %v491
      %v493 = vand.u32 %v492, 4294901760
      %494 = vmatpush1.msra.mxu0 %v493
      %v495 = vand.u32 %v332, 4294901760
      %v496 = vsub.f32 %v332, %v495
      %v497 = vand.u32 %v496, 4294901760
      %v498 = vsub.f32 %v496, %v497
      %v499 = vand.u32 %v498, 4294901760
      %500 = vmatprep.subr.mxu0 %v499
      %v501 = vand.u32 %v331, 4294901760
      %v502 = vsub.f32 %v331, %v501
      %v503 = vand.u32 %v502, 4294901760
      %v504 = vsub.f32 %v502, %v503
      %v505 = vand.u32 %v504, 4294901760
      %506 = vmatpush1.msra.mxu0 %v505
      %v507 = vand.u32 %v329, 4294901760
      %v508 = vsub.f32 %v329, %v507
      %v509 = vand.u32 %v508, 4294901760
      %v510 = vsub.f32 %v508, %v509
      %v511 = vand.u32 %v510, 4294901760
      %512 = vmatprep.subr.mxu0 %v511
      %v513 = vand.u32 %v328, 4294901760
      %v514 = vsub.f32 %v328, %v513
      %v515 = vand.u32 %v514, 4294901760
      %v516 = vsub.f32 %v514, %v515
      %v517 = vand.u32 %v516, 4294901760
      %518 = vmatpush1.msra.mxu0 %v517
      %519 = vmatprep.subr.mxu0 0.0
      %520 = vmatpush2.msra.mxu0 0.0
      %521 = vmatprep.subr.mxu0 0.0
      %522 = vmatpush2.msra.mxu0 0.0
      %523 = vmatprep.subr.mxu0 0.0
      %524 = vmatpush2.msra.mxu0 0.0
      %525 = vmatprep.subr.mxu0 0.0
      %526 = vmatpush2.msra.mxu0 0.0
      %527 = vmatprep.subr.mxu0 0.0
      %528 = vmatpush2.msra.mxu0 0.0
      %529 = vmatprep.subr.mxu0 0.0
      %530 = vmatpush2.msra.mxu0 0.0
      %531 = vmatprep.subr.mxu0 0.0
      %532 = vmatpush2.msra.mxu0 0.0
      %533 = vmatprep.subr.mxu0 0.0
      %534 = vmatpush2.msra.mxu0 0.0
      %535 = vmatprep.subr.mxu0 0.0
      %536 = vmatpush2.msra.mxu0 0.0
      %537 = vmatprep.subr.mxu0 0.0
      %538 = vmatpush2.msra.mxu0 0.0
      %539 = vmatprep.subr.mxu0 0.0
      %540 = vmatpush2.msra.mxu0 0.0
      %541 = vmatprep.subr.mxu0 0.0
      %542 = vmatpush2.msra.mxu0 0.0
      %543 = vmatprep.subr.mxu0 0.0
      %544 = vmatpush2.msra.mxu0 0.0
      %545 = vmatprep.subr.mxu0 0.0
      %546 = vmatpush2.msra.mxu0 0.0
      %547 = vmatprep.subr.mxu0 0.0
      %548 = vmatpush2.msra.mxu0 0.0
      %549 = vmatprep.subr.mxu0 0.0
      %550 = vmatpush2.msra.mxu0 0.0
      %551 = vmatprep.mubr.f32.mxu0 0.0
      %v552 = vand.u32 %v343, 4294901760
      %553 = vmatmul.mubr.f32.gmra.mxu0 %v552
      %v554 = vpop.f32.mrf.mxu0
      %v555 = vadd.f32 %v433, %v554
      %v556 = vpop.f32.mrf.mxu0
      %v557 = vadd.f32 %v435, %v556
      %558 = vdwg.mxu0
      %559 = vmatprep.subr.mxu0 0.0
      %560 = vmatpush1.msra.mxu0 0.0
      %561 = vmatprep.subr.mxu0 0.0
      %562 = vmatpush1.msra.mxu0 0.0
      %563 = vmatprep.subr.mxu0 0.0
      %564 = vmatpush1.msra.mxu0 0.0
      %565 = vmatprep.subr.mxu0 0.0
      %566 = vmatpush1.msra.mxu0 0.0
      %567 = vmatprep.subr.mxu0 0.0
      %568 = vmatpush1.msra.mxu0 0.0
      %569 = vmatprep.subr.mxu0 0.0
      %570 = vmatpush1.msra.mxu0 0.0
      %571 = vmatprep.subr.mxu0 0.0
      %572 = vmatpush1.msra.mxu0 0.0
      %573 = vmatprep.subr.mxu0 0.0
      %574 = vmatpush1.msra.mxu0 0.0
      %575 = vmatprep.subr.mxu0 0.0
      %576 = vmatpush1.msra.mxu0 0.0
      %577 = vmatprep.subr.mxu0 0.0
      %578 = vmatpush1.msra.mxu0 0.0
      %579 = vmatprep.subr.mxu0 0.0
      %580 = vmatpush1.msra.mxu0 0.0
      %v581 = vand.u32 %v347, 4294901760
      %v582 = vsub.f32 %v347, %v581
      %583 = vmatprep.subr.mxu0 %v582
      %v584 = vand.u32 %v345, 4294901760
      %v585 = vsub.f32 %v345, %v584
      %586 = vmatpush1.msra.mxu0 %v585
      %v587 = vand.u32 %v338, 4294901760
      %v588 = vsub.f32 %v338, %v587
      %589 = vmatprep.subr.mxu0 %v588
      %v590 = vand.u32 %v337, 4294901760
      %v591 = vsub.f32 %v337, %v590
      %592 = vmatpush1.msra.mxu0 %v591
      %v593 = vand.u32 %v335, 4294901760
      %v594 = vsub.f32 %v335, %v593
      %595 = vmatprep.subr.mxu0 %v594
      %v596 = vand.u32 %v334, 4294901760
      %v597 = vsub.f32 %v334, %v596
      %598 = vmatpush1.msra.mxu0 %v597
      %v599 = vand.u32 %v332, 4294901760
      %v600 = vsub.f32 %v332, %v599
      %601 = vmatprep.subr.mxu0 %v600
      %v602 = vand.u32 %v331, 4294901760
      %v603 = vsub.f32 %v331, %v602
      %604 = vmatpush1.msra.mxu0 %v603
      %v605 = vand.u32 %v329, 4294901760
      %v606 = vsub.f32 %v329, %v605
      %607 = vmatprep.subr.mxu0 %v606
      %v608 = vand.u32 %v328, 4294901760
      %v609 = vsub.f32 %v328, %v608
      %610 = vmatpush1.msra.mxu0 %v609
      %611 = vmatprep.subr.mxu0 0.0
      %612 = vmatpush2.msra.mxu0 0.0
      %613 = vmatprep.subr.mxu0 0.0
      %614 = vmatpush2.msra.mxu0 0.0
      %615 = vmatprep.subr.mxu0 0.0
      %616 = vmatpush2.msra.mxu0 0.0
      %617 = vmatprep.subr.mxu0 0.0
      %618 = vmatpush2.msra.mxu0 0.0
      %619 = vmatprep.subr.mxu0 0.0
      %620 = vmatpush2.msra.mxu0 0.0
      %621 = vmatprep.subr.mxu0 0.0
      %622 = vmatpush2.msra.mxu0 0.0
      %623 = vmatprep.subr.mxu0 0.0
      %624 = vmatpush2.msra.mxu0 0.0
      %625 = vmatprep.subr.mxu0 0.0
      %626 = vmatpush2.msra.mxu0 0.0
      %627 = vmatprep.subr.mxu0 0.0
      %628 = vmatpush2.msra.mxu0 0.0
      %629 = vmatprep.subr.mxu0 0.0
      %630 = vmatpush2.msra.mxu0 0.0
      %631 = vmatprep.subr.mxu0 0.0
      %632 = vmatpush2.msra.mxu0 0.0
      %633 = vmatprep.subr.mxu0 0.0
      %634 = vmatpush2.msra.mxu0 0.0
      %635 = vmatprep.subr.mxu0 0.0
      %636 = vmatpush2.msra.mxu0 0.0
      %637 = vmatprep.subr.mxu0 0.0
      %638 = vmatpush2.msra.mxu0 0.0
      %639 = vmatprep.subr.mxu0 0.0
      %640 = vmatpush2.msra.mxu0 0.0
      %641 = vmatprep.subr.mxu0 0.0
      %642 = vmatpush2.msra.mxu0 0.0
      %643 = vmatprep.mubr.f32.mxu0 0.0
      %v644 = vand.u32 %v343, 4294901760
      %v645 = vsub.f32 %v343, %v644
      %646 = vmatmul.mubr.f32.gmra.mxu0 %v645
      %v647 = vpop.f32.mrf.mxu0
      %v648 = vadd.f32 %v555, %v647
      %v649 = vpop.f32.mrf.mxu0
      %v650 = vadd.f32 %v557, %v649
      %651 = vdwg.mxu0
      %652 = vmatprep.subr.mxu0 0.0
      %653 = vmatpush1.msra.mxu0 0.0
      %654 = vmatprep.subr.mxu0 0.0
      %655 = vmatpush1.msra.mxu0 0.0
      %656 = vmatprep.subr.mxu0 0.0
      %657 = vmatpush1.msra.mxu0 0.0
      %658 = vmatprep.subr.mxu0 0.0
      %659 = vmatpush1.msra.mxu0 0.0
      %660 = vmatprep.subr.mxu0 0.0
      %661 = vmatpush1.msra.mxu0 0.0
      %662 = vmatprep.subr.mxu0 0.0
      %663 = vmatpush1.msra.mxu0 0.0
      %664 = vmatprep.subr.mxu0 0.0
      %665 = vmatpush1.msra.mxu0 0.0
      %666 = vmatprep.subr.mxu0 0.0
      %667 = vmatpush1.msra.mxu0 0.0
      %668 = vmatprep.subr.mxu0 0.0
      %669 = vmatpush1.msra.mxu0 0.0
      %670 = vmatprep.subr.mxu0 0.0
      %671 = vmatpush1.msra.mxu0 0.0
      %672 = vmatprep.subr.mxu0 0.0
      %673 = vmatpush1.msra.mxu0 0.0
      %v674 = vand.u32 %v347, 4294901760
      %675 = vmatprep.subr.mxu0 %v674
      %v676 = vand.u32 %v345, 4294901760
      %677 = vmatpush1.msra.mxu0 %v676
      %v678 = vand.u32 %v338, 4294901760
      %679 = vmatprep.subr.mxu0 %v678
      %v680 = vand.u32 %v337, 4294901760
      %681 = vmatpush1.msra.mxu0 %v680
      %v682 = vand.u32 %v335, 4294901760
      %683 = vmatprep.subr.mxu0 %v682
      %v684 = vand.u32 %v334, 4294901760
      %685 = vmatpush1.msra.mxu0 %v684
      %v686 = vand.u32 %v332, 4294901760
      %687 = vmatprep.subr.mxu0 %v686
      %v688 = vand.u32 %v331, 4294901760
      %689 = vmatpush1.msra.mxu0 %v688
      %v690 = vand.u32 %v329, 4294901760
      %691 = vmatprep.subr.mxu0 %v690
      %v692 = vand.u32 %v328, 4294901760
      %693 = vmatpush1.msra.mxu0 %v692
      %694 = vmatprep.subr.mxu0 0.0
      %695 = vmatpush2.msra.mxu0 0.0
      %696 = vmatprep.subr.mxu0 0.0
      %697 = vmatpush2.msra.mxu0 0.0
      %698 = vmatprep.subr.mxu0 0.0
      %699 = vmatpush2.msra.mxu0 0.0
      %700 = vmatprep.subr.mxu0 0.0
      %701 = vmatpush2.msra.mxu0 0.0
      %702 = vmatprep.subr.mxu0 0.0
      %703 = vmatpush2.msra.mxu0 0.0
      %704 = vmatprep.subr.mxu0 0.0
      %705 = vmatpush2.msra.mxu0 0.0
      %706 = vmatprep.subr.mxu0 0.0
      %707 = vmatpush2.msra.mxu0 0.0
      %708 = vmatprep.subr.mxu0 0.0
      %709 = vmatpush2.msra.mxu0 0.0
      %710 = vmatprep.subr.mxu0 0.0
      %711 = vmatpush2.msra.mxu0 0.0
      %712 = vmatprep.subr.mxu0 0.0
      %713 = vmatpush2.msra.mxu0 0.0
      %714 = vmatprep.subr.mxu0 0.0
      %715 = vmatpush2.msra.mxu0 0.0
      %716 = vmatprep.subr.mxu0 0.0
      %717 = vmatpush2.msra.mxu0 0.0
      %718 = vmatprep.subr.mxu0 0.0
      %719 = vmatpush2.msra.mxu0 0.0
      %720 = vmatprep.subr.mxu0 0.0
      %721 = vmatpush2.msra.mxu0 0.0
      %722 = vmatprep.subr.mxu0 0.0
      %723 = vmatpush2.msra.mxu0 0.0
      %724 = vmatprep.subr.mxu0 0.0
      %725 = vmatpush2.msra.mxu0 0.0
      %726 = vmatprep.mubr.f32.mxu0 0.0
      %v727 = vand.u32 %v343, 4294901760
      %v728 = vsub.f32 %v343, %v727
      %v729 = vand.u32 %v728, 4294901760
      %730 = vmatmul.mubr.f32.gmra.mxu0 %v729
      %v731 = vpop.f32.mrf.mxu0
      %v732 = vadd.f32 %v648, %v731
      %v733 = vpop.f32.mrf.mxu0
      %v734 = vadd.f32 %v650, %v733
      %735 = vdwg.mxu0
      %736 = vmatprep.subr.mxu0 0.0
      %737 = vmatpush1.msra.mxu0 0.0
      %738 = vmatprep.subr.mxu0 0.0
      %739 = vmatpush1.msra.mxu0 0.0
      %740 = vmatprep.subr.mxu0 0.0
      %741 = vmatpush1.msra.mxu0 0.0
      %742 = vmatprep.subr.mxu0 0.0
      %743 = vmatpush1.msra.mxu0 0.0
      %744 = vmatprep.subr.mxu0 0.0
      %745 = vmatpush1.msra.mxu0 0.0
      %746 = vmatprep.subr.mxu0 0.0
      %747 = vmatpush1.msra.mxu0 0.0
      %748 = vmatprep.subr.mxu0 0.0
      %749 = vmatpush1.msra.mxu0 0.0
      %750 = vmatprep.subr.mxu0 0.0
      %751 = vmatpush1.msra.mxu0 0.0
      %752 = vmatprep.subr.mxu0 0.0
      %753 = vmatpush1.msra.mxu0 0.0
      %754 = vmatprep.subr.mxu0 0.0
      %755 = vmatpush1.msra.mxu0 0.0
      %756 = vmatprep.subr.mxu0 0.0
      %757 = vmatpush1.msra.mxu0 0.0
      %v758 = vand.u32 %v347, 4294901760
      %v759 = vsub.f32 %v347, %v758
      %v760 = vand.u32 %v759, 4294901760
      %761 = vmatprep.subr.mxu0 %v760
      %v762 = vand.u32 %v345, 4294901760
      %v763 = vsub.f32 %v345, %v762
      %v764 = vand.u32 %v763, 4294901760
      %765 = vmatpush1.msra.mxu0 %v764
      %v766 = vand.u32 %v338, 4294901760
      %v767 = vsub.f32 %v338, %v766
      %v768 = vand.u32 %v767, 4294901760
      %769 = vmatprep.subr.mxu0 %v768
      %v770 = vand.u32 %v337, 4294901760
      %v771 = vsub.f32 %v337, %v770
      %v772 = vand.u32 %v771, 4294901760
      %773 = vmatpush1.msra.mxu0 %v772
      %v774 = vand.u32 %v335, 4294901760
      %v775 = vsub.f32 %v335, %v774
      %v776 = vand.u32 %v775, 4294901760
      %777 = vmatprep.subr.mxu0 %v776
      %v778 = vand.u32 %v334, 4294901760
      %v779 = vsub.f32 %v334, %v778
      %v780 = vand.u32 %v779, 4294901760
      %781 = vmatpush1.msra.mxu0 %v780
      %v782 = vand.u32 %v332, 4294901760
      %v783 = vsub.f32 %v332, %v782
      %v784 = vand.u32 %v783, 4294901760
      %785 = vmatprep.subr.mxu0 %v784
      %v786 = vand.u32 %v331, 4294901760
      %v787 = vsub.f32 %v331, %v786
      %v788 = vand.u32 %v787, 4294901760
      %789 = vmatpush1.msra.mxu0 %v788
      %v790 = vand.u32 %v329, 4294901760
      %v791 = vsub.f32 %v329, %v790
      %v792 = vand.u32 %v791, 4294901760
      %793 = vmatprep.subr.mxu0 %v792
      %v794 = vand.u32 %v328, 4294901760
      %v795 = vsub.f32 %v328, %v794
      %v796 = vand.u32 %v795, 4294901760
      %797 = vmatpush1.msra.mxu0 %v796
      %798 = vmatprep.subr.mxu0 0.0
      %799 = vmatpush2.msra.mxu0 0.0
      %800 = vmatprep.subr.mxu0 0.0
      %801 = vmatpush2.msra.mxu0 0.0
      %802 = vmatprep.subr.mxu0 0.0
      %803 = vmatpush2.msra.mxu0 0.0
      %804 = vmatprep.subr.mxu0 0.0
      %805 = vmatpush2.msra.mxu0 0.0
      %806 = vmatprep.subr.mxu0 0.0
      %807 = vmatpush2.msra.mxu0 0.0
      %808 = vmatprep.subr.mxu0 0.0
      %809 = vmatpush2.msra.mxu0 0.0
      %810 = vmatprep.subr.mxu0 0.0
      %811 = vmatpush2.msra.mxu0 0.0
      %812 = vmatprep.subr.mxu0 0.0
      %813 = vmatpush2.msra.mxu0 0.0
      %814 = vmatprep.subr.mxu0 0.0
      %815 = vmatpush2.msra.mxu0 0.0
      %816 = vmatprep.subr.mxu0 0.0
      %817 = vmatpush2.msra.mxu0 0.0
      %818 = vmatprep.subr.mxu0 0.0
      %819 = vmatpush2.msra.mxu0 0.0
      %820 = vmatprep.subr.mxu0 0.0
      %821 = vmatpush2.msra.mxu0 0.0
      %822 = vmatprep.subr.mxu0 0.0
      %823 = vmatpush2.msra.mxu0 0.0
      %824 = vmatprep.subr.mxu0 0.0
      %825 = vmatpush2.msra.mxu0 0.0
      %826 = vmatprep.subr.mxu0 0.0
      %827 = vmatpush2.msra.mxu0 0.0
      %828 = vmatprep.subr.mxu0 0.0
      %829 = vmatpush2.msra.mxu0 0.0
      %830 = vmatprep.mubr.f32.mxu0 0.0
      %v831 = vand.u32 %v343, 4294901760
      %832 = vmatmul.mubr.f32.gmra.mxu0 %v831
      %v833 = vpop.f32.mrf.mxu0
      %v834 = vadd.f32 %v732, %v833
      %v835 = vpop.f32.mrf.mxu0
      %v836 = vadd.f32 %v734, %v835
      %837 = vdwg.mxu0
      %838 = vmatprep.subr.mxu0 0.0
      %839 = vmatpush1.msra.mxu0 0.0
      %840 = vmatprep.subr.mxu0 0.0
      %841 = vmatpush1.msra.mxu0 0.0
      %842 = vmatprep.subr.mxu0 0.0
      %843 = vmatpush1.msra.mxu0 0.0
      %844 = vmatprep.subr.mxu0 0.0
      %845 = vmatpush1.msra.mxu0 0.0
      %846 = vmatprep.subr.mxu0 0.0
      %847 = vmatpush1.msra.mxu0 0.0
      %848 = vmatprep.subr.mxu0 0.0
      %849 = vmatpush1.msra.mxu0 0.0
      %850 = vmatprep.subr.mxu0 0.0
      %851 = vmatpush1.msra.mxu0 0.0
      %852 = vmatprep.subr.mxu0 0.0
      %853 = vmatpush1.msra.mxu0 0.0
      %854 = vmatprep.subr.mxu0 0.0
      %855 = vmatpush1.msra.mxu0 0.0
      %856 = vmatprep.subr.mxu0 0.0
      %857 = vmatpush1.msra.mxu0 0.0
      %858 = vmatprep.subr.mxu0 0.0
      %859 = vmatpush1.msra.mxu0 0.0
      %v860 = vand.u32 %v347, 4294901760
      %861 = vmatprep.subr.mxu0 %v860
      %v862 = vand.u32 %v345, 4294901760
      %863 = vmatpush1.msra.mxu0 %v862
      %v864 = vand.u32 %v338, 4294901760
      %865 = vmatprep.subr.mxu0 %v864
      %v866 = vand.u32 %v337, 4294901760
      %867 = vmatpush1.msra.mxu0 %v866
      %v868 = vand.u32 %v335, 4294901760
      %869 = vmatprep.subr.mxu0 %v868
      %v870 = vand.u32 %v334, 4294901760
      %871 = vmatpush1.msra.mxu0 %v870
      %v872 = vand.u32 %v332, 4294901760
      %873 = vmatprep.subr.mxu0 %v872
      %v874 = vand.u32 %v331, 4294901760
      %875 = vmatpush1.msra.mxu0 %v874
      %v876 = vand.u32 %v329, 4294901760
      %877 = vmatprep.subr.mxu0 %v876
      %v878 = vand.u32 %v328, 4294901760
      %879 = vmatpush1.msra.mxu0 %v878
      %880 = vmatprep.subr.mxu0 0.0
      %881 = vmatpush2.msra.mxu0 0.0
      %882 = vmatprep.subr.mxu0 0.0
      %883 = vmatpush2.msra.mxu0 0.0
      %884 = vmatprep.subr.mxu0 0.0
      %885 = vmatpush2.msra.mxu0 0.0
      %886 = vmatprep.subr.mxu0 0.0
      %887 = vmatpush2.msra.mxu0 0.0
      %888 = vmatprep.subr.mxu0 0.0
      %889 = vmatpush2.msra.mxu0 0.0
      %890 = vmatprep.subr.mxu0 0.0
      %891 = vmatpush2.msra.mxu0 0.0
      %892 = vmatprep.subr.mxu0 0.0
      %893 = vmatpush2.msra.mxu0 0.0
      %894 = vmatprep.subr.mxu0 0.0
      %895 = vmatpush2.msra.mxu0 0.0
      %896 = vmatprep.subr.mxu0 0.0
      %897 = vmatpush2.msra.mxu0 0.0
      %898 = vmatprep.subr.mxu0 0.0
      %899 = vmatpush2.msra.mxu0 0.0
      %900 = vmatprep.subr.mxu0 0.0
      %901 = vmatpush2.msra.mxu0 0.0
      %902 = vmatprep.subr.mxu0 0.0
      %903 = vmatpush2.msra.mxu0 0.0
      %904 = vmatprep.subr.mxu0 0.0
      %905 = vmatpush2.msra.mxu0 0.0
      %906 = vmatprep.subr.mxu0 0.0
      %907 = vmatpush2.msra.mxu0 0.0
      %908 = vmatprep.subr.mxu0 0.0
      %909 = vmatpush2.msra.mxu0 0.0
      %910 = vmatprep.subr.mxu0 0.0
      %911 = vmatpush2.msra.mxu0 0.0
      %912 = vmatprep.mubr.f32.mxu0 0.0
      %v913 = vand.u32 %v343, 4294901760
      %914 = vmatmul.mubr.f32.gmra.mxu0 %v913
      %v915 = vpop.f32.mrf.mxu0
      %v916 = vadd.f32 %v834, %v915
      %v917 = vpop.f32.mrf.mxu0
      %v918 = vadd.f32 %v836, %v917
      %919 = vdwg.mxu0
      %920 = vmatprep.subr.mxu0 0.0
      %921 = vmatpush1.msra.mxu0 0.0
      %922 = vmatprep.subr.mxu0 0.0
      %923 = vmatpush1.msra.mxu0 0.0
      %924 = vmatprep.subr.mxu0 0.0
      %925 = vmatpush1.msra.mxu0 0.0
      %926 = vmatprep.subr.mxu0 0.0
      %927 = vmatpush1.msra.mxu0 0.0
      %928 = vmatprep.subr.mxu0 0.0
      %929 = vmatpush1.msra.mxu0 0.0
      %930 = vmatprep.subr.mxu0 0.0
      %931 = vmatpush1.msra.mxu0 0.0
      %932 = vmatprep.subr.mxu0 0.0
      %933 = vmatpush1.msra.mxu0 0.0
      %934 = vmatprep.subr.mxu0 0.0
      %935 = vmatpush1.msra.mxu0 0.0
      %936 = vmatprep.subr.mxu0 0.0
      %937 = vmatpush1.msra.mxu0 0.0
      %938 = vmatprep.subr.mxu0 0.0
      %939 = vmatpush1.msra.mxu0 0.0
      %940 = vmatprep.subr.mxu0 0.0
      %941 = vmatpush1.msra.mxu0 0.0
      %942 = vmatprep.subr.mxu0 0.0
      %v943 = vand.u32 %v349, 4294901760
      %944 = vmatpush1.msra.mxu0 %v943
      %945 = vmatprep.subr.mxu0 0.0
      %v946 = vand.u32 %v339, 4294901760
      %947 = vmatpush1.msra.mxu0 %v946
      %948 = vmatprep.subr.mxu0 0.0
      %v949 = vand.u32 %v336, 4294901760
      %950 = vmatpush1.msra.mxu0 %v949
      %951 = vmatprep.subr.mxu0 0.0
      %v952 = vand.u32 %v333, 4294901760
      %953 = vmatpush1.msra.mxu0 %v952
      %954 = vmatprep.subr.mxu0 0.0
      %v955 = vand.u32 %v330, 4294901760
      %956 = vmatpush1.msra.mxu0 %v955
      %957 = vmatprep.subr.mxu0 0.0
      %958 = vmatpush2.msra.mxu0 0.0
      %959 = vmatprep.subr.mxu0 0.0
      %960 = vmatpush2.msra.mxu0 0.0
      %961 = vmatprep.subr.mxu0 0.0
      %962 = vmatpush2.msra.mxu0 0.0
      %963 = vmatprep.subr.mxu0 0.0
      %964 = vmatpush2.msra.mxu0 0.0
      %965 = vmatprep.subr.mxu0 0.0
      %966 = vmatpush2.msra.mxu0 0.0
      %967 = vmatprep.subr.mxu0 0.0
      %968 = vmatpush2.msra.mxu0 0.0
      %969 = vmatprep.subr.mxu0 0.0
      %970 = vmatpush2.msra.mxu0 0.0
      %971 = vmatprep.subr.mxu0 0.0
      %972 = vmatpush2.msra.mxu0 0.0
      %973 = vmatprep.subr.mxu0 0.0
      %974 = vmatpush2.msra.mxu0 0.0
      %975 = vmatprep.subr.mxu0 0.0
      %976 = vmatpush2.msra.mxu0 0.0
      %977 = vmatprep.subr.mxu0 0.0
      %978 = vmatpush2.msra.mxu0 0.0
      %979 = vmatprep.subr.mxu0 0.0
      %980 = vmatpush2.msra.mxu0 0.0
      %981 = vmatprep.subr.mxu0 0.0
      %982 = vmatpush2.msra.mxu0 0.0
      %983 = vmatprep.subr.mxu0 0.0
      %984 = vmatpush2.msra.mxu0 0.0
      %985 = vmatprep.subr.mxu0 0.0
      %986 = vmatpush2.msra.mxu0 0.0
      %987 = vmatprep.subr.mxu0 0.0
      %988 = vmatpush2.msra.mxu0 0.0
      %989 = vmatprep.mubr.f32.mxu0 0.0
      %v990 = vand.u32 %v343, 4294901760
      %v991 = vsub.f32 %v343, %v990
      %v992 = vand.u32 %v991, 4294901760
      %v993 = vsub.f32 %v991, %v992
      %v994 = vand.u32 %v993, 4294901760
      %995 = vmatmul.mubr.f32.gmra.mxu0 %v994
      %v996 = vpop.f32.mrf.mxu0
      %v997 = vadd.f32 0.0, %v996
      %v998 = vpop.f32.mrf.mxu0
      %999 = vdwg.mxu0
      %1000 = vmatprep.subr.mxu0 0.0
      %1001 = vmatpush1.msra.mxu0 0.0
      %1002 = vmatprep.subr.mxu0 0.0
      %1003 = vmatpush1.msra.mxu0 0.0
      %1004 = vmatprep.subr.mxu0 0.0
      %1005 = vmatpush1.msra.mxu0 0.0
      %1006 = vmatprep.subr.mxu0 0.0
      %1007 = vmatpush1.msra.mxu0 0.0
      %1008 = vmatprep.subr.mxu0 0.0
      %1009 = vmatpush1.msra.mxu0 0.0
      %1010 = vmatprep.subr.mxu0 0.0
      %1011 = vmatpush1.msra.mxu0 0.0
      %1012 = vmatprep.subr.mxu0 0.0
      %1013 = vmatpush1.msra.mxu0 0.0
      %1014 = vmatprep.subr.mxu0 0.0
      %1015 = vmatpush1.msra.mxu0 0.0
      %1016 = vmatprep.subr.mxu0 0.0
      %1017 = vmatpush1.msra.mxu0 0.0
      %1018 = vmatprep.subr.mxu0 0.0
      %1019 = vmatpush1.msra.mxu0 0.0
      %1020 = vmatprep.subr.mxu0 0.0
      %1021 = vmatpush1.msra.mxu0 0.0
      %1022 = vmatprep.subr.mxu0 0.0
      %v1023 = vand.u32 %v349, 4294901760
      %v1024 = vsub.f32 %v349, %v1023
      %v1025 = vand.u32 %v1024, 4294901760
      %v1026 = vsub.f32 %v1024, %v1025
      %v1027 = vand.u32 %v1026, 4294901760
      %1028 = vmatpush1.msra.mxu0 %v1027
      %1029 = vmatprep.subr.mxu0 0.0
      %v1030 = vand.u32 %v339, 4294901760
      %v1031 = vsub.f32 %v339, %v1030
      %v1032 = vand.u32 %v1031, 4294901760
      %v1033 = vsub.f32 %v1031, %v1032
      %v1034 = vand.u32 %v1033, 4294901760
      %1035 = vmatpush1.msra.mxu0 %v1034
      %1036 = vmatprep.subr.mxu0 0.0
      %v1037 = vand.u32 %v336, 4294901760
      %v1038 = vsub.f32 %v336, %v1037
      %v1039 = vand.u32 %v1038, 4294901760
      %v1040 = vsub.f32 %v1038, %v1039
      %v1041 = vand.u32 %v1040, 4294901760
      %1042 = vmatpush1.msra.mxu0 %v1041
      %1043 = vmatprep.subr.mxu0 0.0
      %v1044 = vand.u32 %v333, 4294901760
      %v1045 = vsub.f32 %v333, %v1044
      %v1046 = vand.u32 %v1045, 4294901760
      %v1047 = vsub.f32 %v1045, %v1046
      %v1048 = vand.u32 %v1047, 4294901760
      %1049 = vmatpush1.msra.mxu0 %v1048
      %1050 = vmatprep.subr.mxu0 0.0
      %v1051 = vand.u32 %v330, 4294901760
      %v1052 = vsub.f32 %v330, %v1051
      %v1053 = vand.u32 %v1052, 4294901760
      %v1054 = vsub.f32 %v1052, %v1053
      %v1055 = vand.u32 %v1054, 4294901760
      %1056 = vmatpush1.msra.mxu0 %v1055
      %1057 = vmatprep.subr.mxu0 0.0
      %1058 = vmatpush2.msra.mxu0 0.0
      %1059 = vmatprep.subr.mxu0 0.0
      %1060 = vmatpush2.msra.mxu0 0.0
      %1061 = vmatprep.subr.mxu0 0.0
      %1062 = vmatpush2.msra.mxu0 0.0
      %1063 = vmatprep.subr.mxu0 0.0
      %1064 = vmatpush2.msra.mxu0 0.0
      %1065 = vmatprep.subr.mxu0 0.0
      %1066 = vmatpush2.msra.mxu0 0.0
      %1067 = vmatprep.subr.mxu0 0.0
      %1068 = vmatpush2.msra.mxu0 0.0
      %1069 = vmatprep.subr.mxu0 0.0
      %1070 = vmatpush2.msra.mxu0 0.0
      %1071 = vmatprep.subr.mxu0 0.0
      %1072 = vmatpush2.msra.mxu0 0.0
      %1073 = vmatprep.subr.mxu0 0.0
      %1074 = vmatpush2.msra.mxu0 0.0
      %1075 = vmatprep.subr.mxu0 0.0
      %1076 = vmatpush2.msra.mxu0 0.0
      %1077 = vmatprep.subr.mxu0 0.0
      %1078 = vmatpush2.msra.mxu0 0.0
      %1079 = vmatprep.subr.mxu0 0.0
      %1080 = vmatpush2.msra.mxu0 0.0
      %1081 = vmatprep.subr.mxu0 0.0
      %1082 = vmatpush2.msra.mxu0 0.0
      %1083 = vmatprep.subr.mxu0 0.0
      %1084 = vmatpush2.msra.mxu0 0.0
      %1085 = vmatprep.subr.mxu0 0.0
      %1086 = vmatpush2.msra.mxu0 0.0
      %1087 = vmatprep.subr.mxu0 0.0
      %1088 = vmatpush2.msra.mxu0 0.0
      %1089 = vmatprep.mubr.f32.mxu0 0.0
      %v1090 = vand.u32 %v343, 4294901760
      %1091 = vmatmul.mubr.f32.gmra.mxu0 %v1090
      %v1092 = vpop.f32.mrf.mxu0
      %v1093 = vadd.f32 %v997, %v1092
      %v1094 = vpop.f32.mrf.mxu0
      %1095 = vdwg.mxu0
      %1096 = vmatprep.subr.mxu0 0.0
      %1097 = vmatpush1.msra.mxu0 0.0
      %1098 = vmatprep.subr.mxu0 0.0
      %1099 = vmatpush1.msra.mxu0 0.0
      %1100 = vmatprep.subr.mxu0 0.0
      %1101 = vmatpush1.msra.mxu0 0.0
      %1102 = vmatprep.subr.mxu0 0.0
      %1103 = vmatpush1.msra.mxu0 0.0
      %1104 = vmatprep.subr.mxu0 0.0
      %1105 = vmatpush1.msra.mxu0 0.0
      %1106 = vmatprep.subr.mxu0 0.0
      %1107 = vmatpush1.msra.mxu0 0.0
      %1108 = vmatprep.subr.mxu0 0.0
      %1109 = vmatpush1.msra.mxu0 0.0
      %1110 = vmatprep.subr.mxu0 0.0
      %1111 = vmatpush1.msra.mxu0 0.0
      %1112 = vmatprep.subr.mxu0 0.0
      %1113 = vmatpush1.msra.mxu0 0.0
      %1114 = vmatprep.subr.mxu0 0.0
      %1115 = vmatpush1.msra.mxu0 0.0
      %1116 = vmatprep.subr.mxu0 0.0
      %1117 = vmatpush1.msra.mxu0 0.0
      %1118 = vmatprep.subr.mxu0 0.0
      %v1119 = vand.u32 %v349, 4294901760
      %v1120 = vsub.f32 %v349, %v1119
      %1121 = vmatpush1.msra.mxu0 %v1120
      %1122 = vmatprep.subr.mxu0 0.0
      %v1123 = vand.u32 %v339, 4294901760
      %v1124 = vsub.f32 %v339, %v1123
      %1125 = vmatpush1.msra.mxu0 %v1124
      %1126 = vmatprep.subr.mxu0 0.0
      %v1127 = vand.u32 %v336, 4294901760
      %v1128 = vsub.f32 %v336, %v1127
      %1129 = vmatpush1.msra.mxu0 %v1128
      %1130 = vmatprep.subr.mxu0 0.0
      %v1131 = vand.u32 %v333, 4294901760
      %v1132 = vsub.f32 %v333, %v1131
      %1133 = vmatpush1.msra.mxu0 %v1132
      %1134 = vmatprep.subr.mxu0 0.0
      %v1135 = vand.u32 %v330, 4294901760
      %v1136 = vsub.f32 %v330, %v1135
      %1137 = vmatpush1.msra.mxu0 %v1136
      %1138 = vmatprep.subr.mxu0 0.0
      %1139 = vmatpush2.msra.mxu0 0.0
      %1140 = vmatprep.subr.mxu0 0.0
      %1141 = vmatpush2.msra.mxu0 0.0
      %1142 = vmatprep.subr.mxu0 0.0
      %1143 = vmatpush2.msra.mxu0 0.0
      %1144 = vmatprep.subr.mxu0 0.0
      %1145 = vmatpush2.msra.mxu0 0.0
      %1146 = vmatprep.subr.mxu0 0.0
      %1147 = vmatpush2.msra.mxu0 0.0
      %1148 = vmatprep.subr.mxu0 0.0
      %1149 = vmatpush2.msra.mxu0 0.0
      %1150 = vmatprep.subr.mxu0 0.0
      %1151 = vmatpush2.msra.mxu0 0.0
      %1152 = vmatprep.subr.mxu0 0.0
      %1153 = vmatpush2.msra.mxu0 0.0
      %1154 = vmatprep.subr.mxu0 0.0
      %1155 = vmatpush2.msra.mxu0 0.0
      %1156 = vmatprep.subr.mxu0 0.0
      %1157 = vmatpush2.msra.mxu0 0.0
      %1158 = vmatprep.subr.mxu0 0.0
      %1159 = vmatpush2.msra.mxu0 0.0
      %1160 = vmatprep.subr.mxu0 0.0
      %1161 = vmatpush2.msra.mxu0 0.0
      %1162 = vmatprep.subr.mxu0 0.0
      %1163 = vmatpush2.msra.mxu0 0.0
      %1164 = vmatprep.subr.mxu0 0.0
      %1165 = vmatpush2.msra.mxu0 0.0
      %1166 = vmatprep.subr.mxu0 0.0
      %1167 = vmatpush2.msra.mxu0 0.0
      %1168 = vmatprep.subr.mxu0 0.0
      %1169 = vmatpush2.msra.mxu0 0.0
      %1170 = vmatprep.mubr.f32.mxu0 0.0
      %v1171 = vand.u32 %v343, 4294901760
      %v1172 = vsub.f32 %v343, %v1171
      %1173 = vmatmul.mubr.f32.gmra.mxu0 %v1172
      %v1174 = vpop.f32.mrf.mxu0
      %v1175 = vadd.f32 %v1093, %v1174
      %v1176 = vpop.f32.mrf.mxu0
      %1177 = vdwg.mxu0
      %1178 = vmatprep.subr.mxu0 0.0
      %1179 = vmatpush1.msra.mxu0 0.0
      %1180 = vmatprep.subr.mxu0 0.0
      %1181 = vmatpush1.msra.mxu0 0.0
      %1182 = vmatprep.subr.mxu0 0.0
      %1183 = vmatpush1.msra.mxu0 0.0
      %1184 = vmatprep.subr.mxu0 0.0
      %1185 = vmatpush1.msra.mxu0 0.0
      %1186 = vmatprep.subr.mxu0 0.0
      %1187 = vmatpush1.msra.mxu0 0.0
      %1188 = vmatprep.subr.mxu0 0.0
      %1189 = vmatpush1.msra.mxu0 0.0
      %1190 = vmatprep.subr.mxu0 0.0
      %1191 = vmatpush1.msra.mxu0 0.0
      %1192 = vmatprep.subr.mxu0 0.0
      %1193 = vmatpush1.msra.mxu0 0.0
      %1194 = vmatprep.subr.mxu0 0.0
      %1195 = vmatpush1.msra.mxu0 0.0
      %1196 = vmatprep.subr.mxu0 0.0
      %1197 = vmatpush1.msra.mxu0 0.0
      %1198 = vmatprep.subr.mxu0 0.0
      %1199 = vmatpush1.msra.mxu0 0.0
      %1200 = vmatprep.subr.mxu0 0.0
      %v1201 = vand.u32 %v349, 4294901760
      %1202 = vmatpush1.msra.mxu0 %v1201
      %1203 = vmatprep.subr.mxu0 0.0
      %v1204 = vand.u32 %v339, 4294901760
      %1205 = vmatpush1.msra.mxu0 %v1204
      %1206 = vmatprep.subr.mxu0 0.0
      %v1207 = vand.u32 %v336, 4294901760
      %1208 = vmatpush1.msra.mxu0 %v1207
      %1209 = vmatprep.subr.mxu0 0.0
      %v1210 = vand.u32 %v333, 4294901760
      %1211 = vmatpush1.msra.mxu0 %v1210
      %1212 = vmatprep.subr.mxu0 0.0
      %v1213 = vand.u32 %v330, 4294901760
      %1214 = vmatpush1.msra.mxu0 %v1213
      %1215 = vmatprep.subr.mxu0 0.0
      %1216 = vmatpush2.msra.mxu0 0.0
      %1217 = vmatprep.subr.mxu0 0.0
      %1218 = vmatpush2.msra.mxu0 0.0
      %1219 = vmatprep.subr.mxu0 0.0
      %1220 = vmatpush2.msra.mxu0 0.0
      %1221 = vmatprep.subr.mxu0 0.0
      %1222 = vmatpush2.msra.mxu0 0.0
      %1223 = vmatprep.subr.mxu0 0.0
      %1224 = vmatpush2.msra.mxu0 0.0
      %1225 = vmatprep.subr.mxu0 0.0
      %1226 = vmatpush2.msra.mxu0 0.0
      %1227 = vmatprep.subr.mxu0 0.0
      %1228 = vmatpush2.msra.mxu0 0.0
      %1229 = vmatprep.subr.mxu0 0.0
      %1230 = vmatpush2.msra.mxu0 0.0
      %1231 = vmatprep.subr.mxu0 0.0
      %1232 = vmatpush2.msra.mxu0 0.0
      %1233 = vmatprep.subr.mxu0 0.0
      %1234 = vmatpush2.msra.mxu0 0.0
      %1235 = vmatprep.subr.mxu0 0.0
      %1236 = vmatpush2.msra.mxu0 0.0
      %1237 = vmatprep.subr.mxu0 0.0
      %1238 = vmatpush2.msra.mxu0 0.0
      %1239 = vmatprep.subr.mxu0 0.0
      %1240 = vmatpush2.msra.mxu0 0.0
      %1241 = vmatprep.subr.mxu0 0.0
      %1242 = vmatpush2.msra.mxu0 0.0
      %1243 = vmatprep.subr.mxu0 0.0
      %1244 = vmatpush2.msra.mxu0 0.0
      %1245 = vmatprep.subr.mxu0 0.0
      %1246 = vmatpush2.msra.mxu0 0.0
      %1247 = vmatprep.mubr.f32.mxu0 0.0
      %v1248 = vand.u32 %v343, 4294901760
      %v1249 = vsub.f32 %v343, %v1248
      %v1250 = vand.u32 %v1249, 4294901760
      %1251 = vmatmul.mubr.f32.gmra.mxu0 %v1250
      %v1252 = vpop.f32.mrf.mxu0
      %v1253 = vadd.f32 %v1175, %v1252
      %v1254 = vpop.f32.mrf.mxu0
      %1255 = vdwg.mxu0
      %1256 = vmatprep.subr.mxu0 0.0
      %1257 = vmatpush1.msra.mxu0 0.0
      %1258 = vmatprep.subr.mxu0 0.0
      %1259 = vmatpush1.msra.mxu0 0.0
      %1260 = vmatprep.subr.mxu0 0.0
      %1261 = vmatpush1.msra.mxu0 0.0
      %1262 = vmatprep.subr.mxu0 0.0
      %1263 = vmatpush1.msra.mxu0 0.0
      %1264 = vmatprep.subr.mxu0 0.0
      %1265 = vmatpush1.msra.mxu0 0.0
      %1266 = vmatprep.subr.mxu0 0.0
      %1267 = vmatpush1.msra.mxu0 0.0
      %1268 = vmatprep.subr.mxu0 0.0
      %1269 = vmatpush1.msra.mxu0 0.0
      %1270 = vmatprep.subr.mxu0 0.0
      %1271 = vmatpush1.msra.mxu0 0.0
      %1272 = vmatprep.subr.mxu0 0.0
      %1273 = vmatpush1.msra.mxu0 0.0
      %1274 = vmatprep.subr.mxu0 0.0
      %1275 = vmatpush1.msra.mxu0 0.0
      %1276 = vmatprep.subr.mxu0 0.0
      %1277 = vmatpush1.msra.mxu0 0.0
      %1278 = vmatprep.subr.mxu0 0.0
      %v1279 = vand.u32 %v349, 4294901760
      %v1280 = vsub.f32 %v349, %v1279
      %v1281 = vand.u32 %v1280, 4294901760
      %1282 = vmatpush1.msra.mxu0 %v1281
      %1283 = vmatprep.subr.mxu0 0.0
      %v1284 = vand.u32 %v339, 4294901760
      %v1285 = vsub.f32 %v339, %v1284
      %v1286 = vand.u32 %v1285, 4294901760
      %1287 = vmatpush1.msra.mxu0 %v1286
      %1288 = vmatprep.subr.mxu0 0.0
      %v1289 = vand.u32 %v336, 4294901760
      %v1290 = vsub.f32 %v336, %v1289
      %v1291 = vand.u32 %v1290, 4294901760
      %1292 = vmatpush1.msra.mxu0 %v1291
      %1293 = vmatprep.subr.mxu0 0.0
      %v1294 = vand.u32 %v333, 4294901760
      %v1295 = vsub.f32 %v333, %v1294
      %v1296 = vand.u32 %v1295, 4294901760
      %1297 = vmatpush1.msra.mxu0 %v1296
      %1298 = vmatprep.subr.mxu0 0.0
      %v1299 = vand.u32 %v330, 4294901760
      %v1300 = vsub.f32 %v330, %v1299
      %v1301 = vand.u32 %v1300, 4294901760
      %1302 = vmatpush1.msra.mxu0 %v1301
      %1303 = vmatprep.subr.mxu0 0.0
      %1304 = vmatpush2.msra.mxu0 0.0
      %1305 = vmatprep.subr.mxu0 0.0
      %1306 = vmatpush2.msra.mxu0 0.0
      %1307 = vmatprep.subr.mxu0 0.0
      %1308 = vmatpush2.msra.mxu0 0.0
      %1309 = vmatprep.subr.mxu0 0.0
      %1310 = vmatpush2.msra.mxu0 0.0
      %1311 = vmatprep.subr.mxu0 0.0
      %1312 = vmatpush2.msra.mxu0 0.0
      %1313 = vmatprep.subr.mxu0 0.0
      %1314 = vmatpush2.msra.mxu0 0.0
      %1315 = vmatprep.subr.mxu0 0.0
      %1316 = vmatpush2.msra.mxu0 0.0
      %1317 = vmatprep.subr.mxu0 0.0
      %1318 = vmatpush2.msra.mxu0 0.0
      %1319 = vmatprep.subr.mxu0 0.0
      %1320 = vmatpush2.msra.mxu0 0.0
      %1321 = vmatprep.subr.mxu0 0.0
      %1322 = vmatpush2.msra.mxu0 0.0
      %1323 = vmatprep.subr.mxu0 0.0
      %1324 = vmatpush2.msra.mxu0 0.0
      %1325 = vmatprep.subr.mxu0 0.0
      %1326 = vmatpush2.msra.mxu0 0.0
      %1327 = vmatprep.subr.mxu0 0.0
      %1328 = vmatpush2.msra.mxu0 0.0
      %1329 = vmatprep.subr.mxu0 0.0
      %1330 = vmatpush2.msra.mxu0 0.0
      %1331 = vmatprep.subr.mxu0 0.0
      %1332 = vmatpush2.msra.mxu0 0.0
      %1333 = vmatprep.subr.mxu0 0.0
      %1334 = vmatpush2.msra.mxu0 0.0
      %1335 = vmatprep.mubr.f32.mxu0 0.0
      %v1336 = vand.u32 %v343, 4294901760
      %1337 = vmatmul.mubr.f32.gmra.mxu0 %v1336
      %v1338 = vpop.f32.mrf.mxu0
      %v1339 = vadd.f32 %v1253, %v1338
      %v1340 = vpop.f32.mrf.mxu0
      %1341 = vdwg.mxu0
      %1342 = vmatprep.subr.mxu0 0.0
      %1343 = vmatpush1.msra.mxu0 0.0
      %1344 = vmatprep.subr.mxu0 0.0
      %1345 = vmatpush1.msra.mxu0 0.0
      %1346 = vmatprep.subr.mxu0 0.0
      %1347 = vmatpush1.msra.mxu0 0.0
      %1348 = vmatprep.subr.mxu0 0.0
      %1349 = vmatpush1.msra.mxu0 0.0
      %1350 = vmatprep.subr.mxu0 0.0
      %1351 = vmatpush1.msra.mxu0 0.0
      %1352 = vmatprep.subr.mxu0 0.0
      %1353 = vmatpush1.msra.mxu0 0.0
      %1354 = vmatprep.subr.mxu0 0.0
      %1355 = vmatpush1.msra.mxu0 0.0
      %1356 = vmatprep.subr.mxu0 0.0
      %1357 = vmatpush1.msra.mxu0 0.0
      %1358 = vmatprep.subr.mxu0 0.0
      %1359 = vmatpush1.msra.mxu0 0.0
      %1360 = vmatprep.subr.mxu0 0.0
      %1361 = vmatpush1.msra.mxu0 0.0
      %1362 = vmatprep.subr.mxu0 0.0
      %1363 = vmatpush1.msra.mxu0 0.0
      %1364 = vmatprep.subr.mxu0 0.0
      %v1365 = vand.u32 %v349, 4294901760
      %1366 = vmatpush1.msra.mxu0 %v1365
      %1367 = vmatprep.subr.mxu0 0.0
      %v1368 = vand.u32 %v339, 4294901760
      %1369 = vmatpush1.msra.mxu0 %v1368
      %1370 = vmatprep.subr.mxu0 0.0
      %v1371 = vand.u32 %v336, 4294901760
      %1372 = vmatpush1.msra.mxu0 %v1371
      %1373 = vmatprep.subr.mxu0 0.0
      %v1374 = vand.u32 %v333, 4294901760
      %1375 = vmatpush1.msra.mxu0 %v1374
      %1376 = vmatprep.subr.mxu0 0.0
      %v1377 = vand.u32 %v330, 4294901760
      %1378 = vmatpush1.msra.mxu0 %v1377
      %1379 = vmatprep.subr.mxu0 0.0
      %1380 = vmatpush2.msra.mxu0 0.0
      %1381 = vmatprep.subr.mxu0 0.0
      %1382 = vmatpush2.msra.mxu0 0.0
      %1383 = vmatprep.subr.mxu0 0.0
      %1384 = vmatpush2.msra.mxu0 0.0
      %1385 = vmatprep.subr.mxu0 0.0
      %1386 = vmatpush2.msra.mxu0 0.0
      %1387 = vmatprep.subr.mxu0 0.0
      %1388 = vmatpush2.msra.mxu0 0.0
      %1389 = vmatprep.subr.mxu0 0.0
      %1390 = vmatpush2.msra.mxu0 0.0
      %1391 = vmatprep.subr.mxu0 0.0
      %1392 = vmatpush2.msra.mxu0 0.0
      %1393 = vmatprep.subr.mxu0 0.0
      %1394 = vmatpush2.msra.mxu0 0.0
      %1395 = vmatprep.subr.mxu0 0.0
      %1396 = vmatpush2.msra.mxu0 0.0
      %1397 = vmatprep.subr.mxu0 0.0
      %1398 = vmatpush2.msra.mxu0 0.0
      %1399 = vmatprep.subr.mxu0 0.0
      %1400 = vmatpush2.msra.mxu0 0.0
      %1401 = vmatprep.subr.mxu0 0.0
      %1402 = vmatpush2.msra.mxu0 0.0
      %1403 = vmatprep.subr.mxu0 0.0
      %1404 = vmatpush2.msra.mxu0 0.0
      %1405 = vmatprep.subr.mxu0 0.0
      %1406 = vmatpush2.msra.mxu0 0.0
      %1407 = vmatprep.subr.mxu0 0.0
      %1408 = vmatpush2.msra.mxu0 0.0
      %1409 = vmatprep.subr.mxu0 0.0
      %1410 = vmatpush2.msra.mxu0 0.0
      %1411 = vmatprep.mubr.f32.mxu0 0.0
      %v1412 = vand.u32 %v343, 4294901760
      %1413 = vmatmul.mubr.f32.gmra.mxu0 %v1412
      %v1414 = vpop.f32.mrf.mxu0
      %v1415 = vadd.f32 %v1339, %v1414
      %v1416 = vpop.f32.mrf.mxu0
      %1417 = vdwg.mxu0
      %1418 = vst [vmem:[%s218] sm:$0xff] %v916
      %1419 = vst [vmem:[%s218 + $0x8] sm:$0xff] %v918
      %vm1420 = vcmask 261120
      %1421 = vst.msk [vmem:[%s218 + $0x10] sm:$0xff] %vm1420, %v1415
      %v1422 = vlaneseq
      %v1423 = vand.u32 %v1422, 127
      %v1424 = vadd.s32 %v1423, 128
      %v1425 = vadd.s32 %v1423, 256
      %vm1426 = vcmp.lt.s32.totalorder %v1423, 0
      %v1427 = vsub.s32 0, %v1423
      %v1428 = vsel %vm1426, %v1427, %v1423
      %v1429 = vmul.u32.u64.compose %v1428, 3817748708
      %v1430 = vextract.low.u32 %v1429
      %v1431 = vextract.high.u32 %v1429
      %v1432 = vshrl.u32 %v1431, 4
      %v1433 = vmul.u32 %v1432, 18
      %v1434 = vsub.s32 %v1428, %v1433
      %v1435 = vsub.s32 0, %v1434
      %v1436 = vsel %vm1426, %v1435, %v1434
      %vm1437 = vcmp.lt.s32.totalorder %v1424, 0
      %v1438 = vsub.s32 0, %v1424
      %v1439 = vsel %vm1437, %v1438, %v1424
      %v1440 = vmul.u32.u64.compose %v1439, 3817748708
      %v1441 = vextract.low.u32 %v1440
      %v1442 = vextract.high.u32 %v1440
      %v1443 = vshrl.u32 %v1442, 4
      %v1444 = vmul.u32 %v1443, 18
      %v1445 = vsub.s32 %v1439, %v1444
      %v1446 = vsub.s32 0, %v1445
      %v1447 = vsel %vm1437, %v1446, %v1445
      %vm1448 = vcmp.lt.s32.totalorder %v1425, 0
      %v1449 = vsub.s32 0, %v1425
      %v1450 = vsel %vm1448, %v1449, %v1425
      %v1451 = vmul.u32.u64.compose %v1450, 3817748708
      %v1452 = vextract.low.u32 %v1451
      %v1453 = vextract.high.u32 %v1451
      %v1454 = vshrl.u32 %v1453, 4
      %v1455 = vmul.u32 %v1454, 18
      %v1456 = vsub.s32 %v1450, %v1455
      %v1457 = vsub.s32 0, %v1456
      %v1458 = vsel %vm1448, %v1457, %v1456
      %vm1459 = vcmp.ne.s32.totalorder %v1436, 0
      %vm1460 = vcmp.ne.s32.totalorder %v1447, 0
      %vm1461 = vcmp.ne.s32.totalorder %v1458, 0
      %vm1462 = vcmp.lt.s32.totalorder %v1436, 0
      %vm1463 = vcmp.lt.s32.totalorder %v1447, 0
      %vm1464 = vcmp.lt.s32.totalorder %v1458, 0
      %vm1465 = vmand %vm1462, %vm1459
      %vm1466 = vmand %vm1463, %vm1460
      %vm1467 = vmand %vm1464, %vm1461
      %v1468 = vadd.s32 %v1436, 18
      %v1469 = vadd.s32 %v1447, 18
      %v1470 = vadd.s32 %v1458, 18
      %v1471 = vsel %vm1465, %v1468, %v1436
      %v1472 = vsel %vm1466, %v1469, %v1447
      %v1473 = vsel %vm1467, %v1470, %v1458
      %vm1474 = vcmp.lt.s32.totalorder %v1471, 16
      %vm1475 = vcmp.lt.s32.totalorder %v1472, 16
      %vm1476 = vcmp.lt.s32.totalorder %v1473, 16
      %v1477 = vsel %vm1474, 1, 0
      %v1478 = vsel %vm1475, 1, 0
      %v1479 = vsel %vm1476, 1, 0
      %vm1480 = vcmp.eq.s32.totalorder %v1477, 1
      %vm1481 = vcmp.eq.s32.totalorder %v1478, 1
      %vm1482 = vcmp.eq.s32.totalorder %v1479, 1
      %v1483 = vsel %vm1480, %v916, 0.0
      %v1484 = vsel %vm1481, %v918, 0.0
      %v1485 = vsel %vm1482, %v1415, 0.0
      %v1486 = vadd.f32 %v1483, %v1484
      %v1487 = vsel %vm1420, %v1485, 0.0
      %v1488 = vadd.f32 %v1486, %v1487
      %1489 = vadd.xlane.f32.xlu0 %v1488
      %v1490 = vpop.xlane.xlu0 %1489
      %v1491 = vmul.f32 %v1483, %v1483
      %v1492 = vmul.f32 %v1484, %v1484
      %v1493 = vmul.f32 %v1485, %v1485
      %v1494 = vadd.f32 %v1491, %v1492
      %v1495 = vsel %vm1420, %v1493, 0.0
      %v1496 = vadd.f32 %v1494, %v1495
      %1497 = vadd.xlane.f32.xlu0 %v1496
      %v1498 = vpop.xlane.xlu0 %1497
      %vm1499 = vcmask 7168
      %v1500 = vsel %vm1499, %v1490, %v1498
      %vm1501 = vcmask 15360
      %1502 = vst.msk [vmem:[%s225] sm:$0xff] %vm1501, %v1500
      %p1503 = scmp.lt.s32.totalorder %s19, 1
      %s1504 = scalar_select %p1503, %s19, 1
      %p1505 = scmp.lt.s32.totalorder %s20, 0
      %s1506 = scalar_select %p1505, %s20, 0
      %s1507 = smul.addr %s1506, 3
      %s1508 = smul.addr %s1504, 3
      %s1509 = sadd.s32 %s1507, %s1508
      %s1510 = smul.addr %s1509, 8
      %s1511 = scalar_lea.vmem %s2, %s1510
      %p1512 = scmp.lt.s32.totalorder %s19, 1
      %s1513 = scalar_select %p1512, %s19, 1
      %p1514 = scmp.lt.s32.totalorder %s20, 0
      %s1515 = scalar_select %p1514, %s20, 0
      %s1516 = sadd.s32 %s1515, %s1513
      %s1517 = smul.addr %s1516, 8
      %s1518 = scalar_lea.vmem %s3, %s1517
      // Predicated region
      $region29: #{conv2d_block_forward.2} parent=27 // pred_check
        %p1519 = pneg %p96
      $region30: #{conv2d_block_forward.2} parent=27 // pred_check_branch
        %1521 = sbr.rel (%p1519) target = $region32
      $region31: #{conv2d_block_forward.2} parent=27 // pred_region
        _
      $region32: #{conv2d_block_forward.2} parent=27 // pred_fallthru
        _
      // Predicated region
      $region33: #{conv2d_block_forward.2} parent=27 // pred_check
        %p1522 = pneg %p124
      $region34: #{conv2d_block_forward.2} parent=27 // pred_check_branch
        %1524 = sbr.rel (%p1522) target = $region36
      $region35: #{conv2d_block_forward.2} parent=27 // pred_region
        _
      $region36: #{conv2d_block_forward.2} parent=27 // pred_fallthru
        _
    $region28: #{conv2d_block_forward.2} parent=5 // pred_fallthru
      _
    %p1525 = scmp.le.s32.totalorder 2, %s10
    // Predicated region
    $region37: #{conv2d_block_forward.2} parent=5 // pred_check
      %p1526 = pneg %p1525
    $region38: #{conv2d_block_forward.2} parent=5 // pred_check_branch
      %1528 = sbr.rel (%p1526) target = $region40
    $region39: #{conv2d_block_forward.2} parent=5 // pred_region
      %s1529 = ssub.s32 %s10, 2
      // Predicated region
      $region41: #{conv2d_block_forward.2} parent=39 // pred_check
        %p1530 = pneg %p102
      $region42: #{conv2d_block_forward.2} parent=39 // pred_check_branch
        %1532 = sbr.rel (%p1530) target = $region44
      $region43: #{conv2d_block_forward.2} parent=39 // pred_region
        %p1533 = scmp.lt.s32.totalorder %s21, 1
        %s1534 = scalar_select %p1533, %s21, 1
        %p1535 = scmp.lt.s32.totalorder %s22, 0
        %s1536 = scalar_select %p1535, %s22, 0
        %s1537 = smul.addr %s1536, 3
        %s1538 = smul.addr %s1534, 3
        %s1539 = sadd.s32 %s1537, %s1538
        %s1540 = smul.addr %s1539, 8
        %s1541 = scalar_lea.vmem %s2, %s1540
      $region44: #{conv2d_block_forward.2} parent=39 // pred_fallthru
        _
      // Predicated region
      $region45: #{conv2d_block_forward.2} parent=39 // pred_check
        %p1542 = pneg %p130
      $region46: #{conv2d_block_forward.2} parent=39 // pred_check_branch
        %1544 = sbr.rel (%p1542) target = $region48
      $region47: #{conv2d_block_forward.2} parent=39 // pred_region
        %p1545 = scmp.lt.s32.totalorder %s21, 1
        %s1546 = scalar_select %p1545, %s21, 1
        %p1547 = scmp.lt.s32.totalorder %s22, 0
        %s1548 = scalar_select %p1547, %s22, 0
        %s1549 = sadd.s32 %s1548, %s1546
        %s1550 = smul.addr %s1549, 8
        %s1551 = scalar_lea.vmem %s3, %s1550
      $region48: #{conv2d_block_forward.2} parent=39 // pred_fallthru
        _
    $region40: #{conv2d_block_forward.2} parent=5 // pred_fallthru
      _
  $region6: #{conv2d_block_forward.2} parent=0 // loop_footer
    %s14 = sadd.s32 1, %s10
  $region7: #{conv2d_block_forward.2} parent=0 // loop_footer_branch
    %9 = sbr.rel target = $region3
  $region8: #{conv2d_block_forward.2} parent=0 // loop_exit
    _

</llo_original>
